<compile_context>
chip_gen: v5e
topology: v5e:2x2
jax: 0.10.0
libtpu: 0.0.40
codegen_flags: <defaults>
</compile_context>

<pallas_src>
import jax
import jax.numpy as jnp
from jax.experimental import pallas as pl
from jax.experimental.pallas import tpu as pltpu

# ----- small DistilBERT-like config (synthetic weights) -----
DIM = 32            # config.dim (hidden size)
N_HEADS = 4
HEAD_DIM = DIM // N_HEADS
HIDDEN_DIM = 128    # FFN inner dim (4 * dim)
N_LAYERS = 2
VOCAB = 100
MAX_POS = 64
NUM_LABELS = 2
LN_EPS = 1e-12
INIT_RANGE = 0.02   # config.initializer_range
VEC_ROWS = 8        # packed small-vector table rows
VEC_LANES = 128     # packed small-vector table lanes (>= max(3*DIM, HIDDEN_DIM))


# --------------------------------------------------------------------------
# in-kernel helpers (all in f32)
# --------------------------------------------------------------------------
def _layernorm(x, g, b):
    mu = jnp.mean(x, axis=-1, keepdims=True)
    var = jnp.mean((x - mu) ** 2, axis=-1, keepdims=True)
    return (x - mu) * jax.lax.rsqrt(var + LN_EPS) * g + b


def _gelu(x):
    # TODO(synk): PyTorch nn.GELU default is exact erf; tanh approximation used
    # here for robust Mosaic lowering (difference is ~1e-3 worst case).
    c = jnp.float32(0.7978845608028654)  # sqrt(2/pi)
    return 0.5 * x * (1.0 + jnp.tanh(c * (x + 0.044715 * x * x * x)))


# --------------------------------------------------------------------------
# fused forward kernel — one grid step per batch element
# --------------------------------------------------------------------------
def fused_forward_kernel(x_ref, mask_ref,
                         wqkv_ref, wo_ref, w1_ref, w2_ref,
                         lvec_ref, gvec_ref, prew_ref, clsw_ref,
                         o_ref):
    """Embedding LN -> N_LAYERS transformer blocks -> CLS pool -> classifier.

    Per grid step (one batch element):
    x_ref    : (S, D)      word + position embeddings (pre-LayerNorm), f32
    mask_ref : (1, 1, S)   additive attention mask (0 = keep, -1e30 = masked key)
    wqkv_ref : (L, D, 3D)  fused Q|K|V projection weights (bf16, Q cols pre-scaled)
    wo_ref   : (L, D, D)   attention output projection (bf16)
    w1_ref   : (L, D, H)   FFN lin1 (bf16)
    w2_ref   : (L, H, D)   FFN lin2 (bf16)
    lvec_ref : (L, 8, 128) per-layer packed f32 vectors:
               rows = [b_qkv, b_o, ln1_g, ln1_b, b_ffn1, b_ffn2, ln2_g, ln2_b]
    gvec_ref : (8, 128)    global packed f32 vectors:
               rows = [emb_ln_g, emb_ln_b, pre_classifier_b, classifier_b]
    prew_ref : (D, D)      pre_classifier weight (bf16, stored (in, out))
    clsw_ref : (D, num_labels) classifier weight (bf16)
    o_ref    : (1, 1, num_labels) logits for this batch element
    """
    S, D = x_ref.shape

    gv = gvec_ref[...]                                        # (8, 128) f32
    x = _layernorm(x_ref[...], gv[0:1, :D], gv[1:2, :D])      # embedding LayerNorm, f32
    mask_add = mask_ref[...]                                  # (1, 1, S) -> bcast (H, Sq, Sk)

    # TODO(synk): at real DistilBERT scale (D=768, L=6, S>=128) turn this unrolled
    # loop into a grid axis ("arbitrary") with per-layer weight streaming and a
    # key-tiled online softmax; at the toy config everything fits in VMEM.
    for layer in range(N_LAYERS):                             # unrolled (N_LAYERS = 2)
        lv = lvec_ref[layer]                                  # (8, 128) f32
        bqkv = lv[0:1, :3 * D]
        bo   = lv[1:2, :D]
        g1   = lv[2:3, :D]
        b1   = lv[3:4, :D]
        bf1  = lv[4:5, :HIDDEN_DIM]
        bf2  = lv[5:6, :D]
        g2   = lv[6:7, :D]
        b2   = lv[7:8, :D]

        # fused QKV projection (bf16 MXU, f32 accumulate). The 1/sqrt(HEAD_DIM)
        # scale is already folded into the Q columns of wqkv.
        qkv = (jnp.dot(x.astype(jnp.bfloat16), wqkv_ref[layer],
                       preferred_element_type=jnp.float32) + bqkv
               ).astype(jnp.bfloat16)                         # (S, 3D)

        # all heads at once: (H, S, HEAD_DIM) views, batched einsums over heads
        q = qkv[:, 0 * D:1 * D].reshape(S, N_HEADS, HEAD_DIM).transpose(1, 0, 2)
        k = qkv[:, 1 * D:2 * D].reshape(S, N_HEADS, HEAD_DIM).transpose(1, 0, 2)
        v = qkv[:, 2 * D:3 * D].reshape(S, N_HEADS, HEAD_DIM).transpose(1, 0, 2)

        s = jnp.einsum('hqd,hkd->hqk', q, k,
                       preferred_element_type=jnp.float32) + mask_add   # (H, S, S) f32
        s = s - jnp.max(s, axis=-1, keepdims=True)
        p = jnp.exp(s)
        p = p * pl.reciprocal(jnp.sum(p, axis=-1, keepdims=True), approx=True)

        ctx = jnp.einsum('hqk,hkd->hqd', p.astype(jnp.bfloat16), v,
                         preferred_element_type=jnp.float32)            # (H, S, HD)
        ctx = ctx.transpose(1, 0, 2).reshape(S, D)                      # (S, D)

        # single output projection GEMM for all heads
        attn = jnp.dot(ctx.astype(jnp.bfloat16), wo_ref[layer],
                       preferred_element_type=jnp.float32) + bo         # (S, D)

        h1 = _layernorm(x + attn, g1, b1)                     # sa_layer_norm (+residual)
        ff = jnp.dot(h1.astype(jnp.bfloat16), w1_ref[layer],
                     preferred_element_type=jnp.float32) + bf1
        ff = _gelu(ff)
        ff = jnp.dot(ff.astype(jnp.bfloat16), w2_ref[layer],
                     preferred_element_type=jnp.float32) + bf2
        x = _layernorm(h1 + ff, g2, b2)                       # output_layer_norm (+residual)

    # CLS pooling: first token of this batch element (single row slice)
    pooled = x[0:1, :]                                        # (1, D)

    # classification head: pre_classifier + ReLU + (dropout=identity) + classifier
    hcls = jnp.dot(pooled.astype(jnp.bfloat16), prew_ref[...],
                   preferred_element_type=jnp.float32) + gv[2:3, :D]
    hcls = jnp.maximum(hcls, 0.0)
    logits = jnp.dot(hcls.astype(jnp.bfloat16), clsw_ref[...],
                     preferred_element_type=jnp.float32) + gv[3:4, :NUM_LABELS]
    o_ref[...] = logits.reshape(1, 1, NUM_LABELS)


# --------------------------------------------------------------------------
# full forward (glue: embedding gather + mask prep + one pallas_call)
# --------------------------------------------------------------------------
def distilbert_classifier(params, input_ids, attention_mask):
    B, S = input_ids.shape
    # embedding lookup is a data-dependent gather -> plain-JAX glue
    word = jnp.take(params['word_emb'], input_ids, axis=0)            # (B, S, D)
    pos = params['pos_emb'][:S][None, :, :]                           # (1, S, D)
    x = (word + pos).astype(jnp.float32).reshape(B * S, DIM)          # flatten tokens
    mask_add = ((1.0 - attention_mask.astype(jnp.float32))
                * jnp.float32(-1e30)).reshape(B, 1, S)                # additive mask
    # NOTE: an all-padding sequence yields uniform attention (not NaN) due to the
    # additive -1e30 mask + max-subtraction; acceptable for this inference kernel.

    L = N_LAYERS
    # rough advisory cost (per whole call) so XLA schedules surrounding ops sensibly
    flops_layer = (2 * S * DIM * 3 * DIM + 2 * (2 * N_HEADS * S * S * HEAD_DIM)
                   + 2 * S * DIM * DIM + 2 * (2 * S * DIM * HIDDEN_DIM))
    flops = B * (L * flops_layer + 2 * DIM * DIM + 2 * DIM * NUM_LABELS)
    transcendentals = B * (L * (N_HEADS * S * S + S * HIDDEN_DIM) + (2 * L + 1) * S)
    weight_bytes = sum(int(params[k].size) * int(params[k].dtype.itemsize)
                       for k in ('wqkv', 'wo', 'w1', 'w2', 'lvecs', 'gvecs',
                                 'pre_w', 'cls_w'))
    bytes_accessed = weight_bytes + x.size * 4 + mask_add.size * 4 + B * NUM_LABELS * 4

    out = pl.pallas_call(
        fused_forward_kernel,
        out_shape=jax.ShapeDtypeStruct((B, 1, NUM_LABELS), jnp.float32),
        grid_spec=pltpu.PrefetchScalarGridSpec(
            num_scalar_prefetch=0,
            grid=(B,),                                        # batch-parallel grid
            in_specs=[
                pl.BlockSpec((S, DIM), lambda b: (b, 0)),                 # tokens of batch b
                pl.BlockSpec((1, 1, S), lambda b: (b, 0, 0)),             # mask of batch b
                # weights: full blocks, constant index_map -> VMEM-resident across steps
                pl.BlockSpec((L, DIM, 3 * DIM), lambda b: (0, 0, 0)),
                pl.BlockSpec((L, DIM, DIM), lambda b: (0, 0, 0)),
                pl.BlockSpec((L, DIM, HIDDEN_DIM), lambda b: (0, 0, 0)),
                pl.BlockSpec((L, HIDDEN_DIM, DIM), lambda b: (0, 0, 0)),
                pl.BlockSpec((L, VEC_ROWS, VEC_LANES), lambda b: (0, 0, 0)),
                pl.BlockSpec((VEC_ROWS, VEC_LANES), lambda b: (0, 0)),
                pl.BlockSpec((DIM, DIM), lambda b: (0, 0)),
                pl.BlockSpec((DIM, NUM_LABELS), lambda b: (0, 0)),
            ],
            out_specs=pl.BlockSpec((1, 1, NUM_LABELS), lambda b: (b, 0, 0)),
        ),
        compiler_params=pltpu.CompilerParams(
            dimension_semantics=("parallel",)),               # 2nd TensorCore on v7x
        cost_estimate=pl.CostEstimate(flops=int(flops),
                                      transcendentals=int(transcendentals),
                                      bytes_accessed=int(bytes_accessed)),
    )(x, mask_add,
      params['wqkv'], params['wo'], params['w1'], params['w2'],
      params['lvecs'], params['gvecs'], params['pre_w'], params['cls_w'])
    return out.reshape(B, NUM_LABELS)


# --------------------------------------------------------------------------
# deterministic parameter init (shapes follow the module __init__ / DistilBERT)
# --------------------------------------------------------------------------
def init_params(key):
    keys = iter(jax.random.split(key, 6 * N_LAYERS + 4))

    def nrm(shape):
        return (INIT_RANGE * jax.random.normal(next(keys), shape)).astype(jnp.float32)

    word_emb = nrm((VOCAB, DIM)).at[0].set(0.0)   # padding_idx row zeroed
    pos_emb = nrm((MAX_POS, DIM))

    # global small-vector table: [emb_ln_g, emb_ln_b, pre_classifier_b, classifier_b]
    gvecs = jnp.zeros((VEC_ROWS, VEC_LANES), jnp.float32)
    gvecs = gvecs.at[0, :DIM].set(1.0)            # LayerNorm gamma = 1, all biases = 0

    scale = jnp.float32(1.0 / (HEAD_DIM ** 0.5))  # attention scale folded into Wq

    wqkv, wo, w1, w2, lvecs = [], [], [], [], []
    for _ in range(N_LAYERS):
        wq = nrm((DIM, DIM)).T * scale            # stored (in, out); 1/sqrt(hd) folded in
        wk = nrm((DIM, DIM)).T
        wv = nrm((DIM, DIM)).T
        wqkv.append(jnp.concatenate([wq, wk, wv], axis=1).astype(jnp.bfloat16))  # (D, 3D)
        wo.append(nrm((DIM, DIM)).T.astype(jnp.bfloat16))                        # (D, D)
        w1.append(nrm((HIDDEN_DIM, DIM)).T.astype(jnp.bfloat16))                 # (D, H)
        w2.append(nrm((DIM, HIDDEN_DIM)).T.astype(jnp.bfloat16))                 # (H, D)
        # [b_qkv, b_o, ln1_g, ln1_b, b_ffn1, b_ffn2, ln2_g, ln2_b]
        # (b_q is zero; if it were nonzero, its first D entries would also need * scale)
        lv = jnp.zeros((VEC_ROWS, VEC_LANES), jnp.float32)
        lv = lv.at[2, :DIM].set(1.0)              # sa_layer_norm gamma
        lv = lv.at[6, :DIM].set(1.0)              # output_layer_norm gamma
        lvecs.append(lv)

    return dict(
        word_emb=word_emb, pos_emb=pos_emb, gvecs=gvecs,
        wqkv=jnp.stack(wqkv), wo=jnp.stack(wo),
        w1=jnp.stack(w1), w2=jnp.stack(w2), lvecs=jnp.stack(lvecs),
        pre_w=nrm((DIM, DIM)).T.astype(jnp.bfloat16),          # pre_classifier (in, out)
        cls_w=nrm((NUM_LABELS, DIM)).T.astype(jnp.bfloat16),   # classifier (in, out)
    )


if __name__ == "__main__":
    key = jax.random.PRNGKey(0)
    pkey, ikey = jax.random.split(key)
    params = init_params(pkey)

    B, S = 2, 8
    input_ids = jax.random.randint(ikey, (B, S), 1, VOCAB, dtype=jnp.int32)
    attention_mask = jnp.array([[1, 1, 1, 1, 1, 1, 1, 1],
                                [1, 1, 1, 1, 1, 1, 0, 0]], dtype=jnp.int32)

    logits = distilbert_classifier(params, input_ids, attention_mask)
    logits = jax.block_until_ready(logits)
    assert logits.shape == (B, NUM_LABELS)
    assert bool(jnp.all(jnp.isfinite(logits)))
    print("KERNEL_OK")
</pallas_src>

<mosaic_0001>
module attributes {stable_mosaic.version = 11 : i64} {
  func.func @fused_forward_kernel(%arg0: i32, %arg1: memref<8x32xf32, #tpu.memory_space<vmem>>, %arg2: memref<1x1x8xf32, #tpu.memory_space<vmem>>, %arg3: memref<2x32x96xbf16, #tpu.memory_space<vmem>>, %arg4: memref<2x32x32xbf16, #tpu.memory_space<vmem>>, %arg5: memref<2x32x128xbf16, #tpu.memory_space<vmem>>, %arg6: memref<2x128x32xbf16, #tpu.memory_space<vmem>>, %arg7: memref<2x8x128xf32, #tpu.memory_space<vmem>>, %arg8: memref<8x128xf32, #tpu.memory_space<vmem>>, %arg9: memref<32x32xbf16, #tpu.memory_space<vmem>>, %arg10: memref<32x2xbf16, #tpu.memory_space<vmem>>, %arg11: memref<1x1x2xf32, #tpu.memory_space<vmem>>) attributes {dimension_semantics = [#tpu.dimension_semantics<parallel>], iteration_bounds = array<i64: 2>, scalar_prefetch = 0 : i64, scratch_operands = 0 : i64, tpu.core_type = #tpu.core_type<tc>, window_params = [{transform_indices = @transform_0, window_bounds = array<i64: 8, 32>}, {transform_indices = @transform_1, window_bounds = array<i64: 1, 1, 8>}, {pipeline_mode = #tpu.pipeline_mode<synchronous>, transform_indices = @transform_2, window_bounds = array<i64: 2, 32, 96>}, {pipeline_mode = #tpu.pipeline_mode<synchronous>, transform_indices = @transform_3, window_bounds = array<i64: 2, 32, 32>}, {pipeline_mode = #tpu.pipeline_mode<synchronous>, transform_indices = @transform_4, window_bounds = array<i64: 2, 32, 128>}, {pipeline_mode = #tpu.pipeline_mode<synchronous>, transform_indices = @transform_5, window_bounds = array<i64: 2, 128, 32>}, {pipeline_mode = #tpu.pipeline_mode<synchronous>, transform_indices = @transform_6, window_bounds = array<i64: 2, 8, 128>}, {pipeline_mode = #tpu.pipeline_mode<synchronous>, transform_indices = @transform_7, window_bounds = array<i64: 8, 128>}, {pipeline_mode = #tpu.pipeline_mode<synchronous>, transform_indices = @transform_8, window_bounds = array<i64: 32, 32>}, {pipeline_mode = #tpu.pipeline_mode<synchronous>, transform_indices = @transform_9, window_bounds = array<i64: 32, 2>}, {transform_indices = @transform_10, window_bounds = array<i64: 1, 1, 2>}]} {
    %c0 = arith.constant 0 : index
    %c0_0 = arith.constant 0 : index
    %0 = vector.load %arg8[%c0, %c0_0] : memref<8x128xf32, #tpu.memory_space<vmem>>, vector<8x128xf32>
    %c0_1 = arith.constant 0 : index
    %c0_2 = arith.constant 0 : index
    %1 = vector.load %arg1[%c0_1, %c0_2] : memref<8x32xf32, #tpu.memory_space<vmem>>, vector<8x32xf32>
    %2 = vector.extract_strided_slice %0 {offsets = [0, 0], sizes = [1, 32], strides = [1, 1]} : vector<8x128xf32> to vector<1x32xf32>
    %3 = vector.extract_strided_slice %0 {offsets = [1, 0], sizes = [1, 32], strides = [1, 1]} : vector<8x128xf32> to vector<1x32xf32>
    %cst = arith.constant dense<0.000000e+00> : vector<8xf32>
    %4 = vector.multi_reduction <add>, %1, %cst [1] : vector<8x32xf32> to vector<8xf32>
    %5 = vector.shape_cast %4 : vector<8xf32> to vector<8x1xf32>
    %cst_3 = arith.constant 3.200000e+01 : f32
    %6 = vector.broadcast %cst_3 : f32 to vector<8x1xf32>
    %7 = arith.divf %5, %6 : vector<8x1xf32>
    %8 = vector.broadcast %7 : vector<8x1xf32> to vector<8x32xf32>
    %9 = arith.subf %1, %8 : vector<8x32xf32>
    %10 = arith.mulf %9, %9 : vector<8x32xf32>
    %cst_4 = arith.constant dense<0.000000e+00> : vector<8xf32>
    %11 = vector.multi_reduction <add>, %10, %cst_4 [1] : vector<8x32xf32> to vector<8xf32>
    %12 = vector.shape_cast %11 : vector<8xf32> to vector<8x1xf32>
    %cst_5 = arith.constant 3.200000e+01 : f32
    %13 = vector.broadcast %cst_5 : f32 to vector<8x1xf32>
    %14 = arith.divf %12, %13 : vector<8x1xf32>
    %15 = vector.broadcast %7 : vector<8x1xf32> to vector<8x32xf32>
    %16 = arith.subf %1, %15 : vector<8x32xf32>
    %cst_6 = arith.constant 9.99999996E-13 : f32
    %17 = vector.broadcast %cst_6 : f32 to vector<8x1xf32>
    %18 = arith.addf %14, %17 : vector<8x1xf32>
    %19 = math.rsqrt %18 : vector<8x1xf32>
    %20 = vector.broadcast %19 : vector<8x1xf32> to vector<8x32xf32>
    %21 = arith.mulf %16, %20 : vector<8x32xf32>
    %22 = vector.broadcast %2 : vector<1x32xf32> to vector<8x32xf32>
    %23 = arith.mulf %21, %22 : vector<8x32xf32>
    %24 = vector.broadcast %3 : vector<1x32xf32> to vector<8x32xf32>
    %25 = arith.addf %23, %24 : vector<8x32xf32>
    %c0_7 = arith.constant 0 : index
    %c0_8 = arith.constant 0 : index
    %c0_9 = arith.constant 0 : index
    %26 = vector.load %arg2[%c0_7, %c0_8, %c0_9] : memref<1x1x8xf32, #tpu.memory_space<vmem>>, vector<1x1x8xf32>
    %c0_10 = arith.constant 0 : index
    %c0_11 = arith.constant 0 : index
    %c0_12 = arith.constant 0 : index
    %27 = vector.load %arg7[%c0_10, %c0_11, %c0_12] : memref<2x8x128xf32, #tpu.memory_space<vmem>>, vector<1x8x128xf32>
    %28 = vector.shape_cast %27 : vector<1x8x128xf32> to vector<8x128xf32>
    %29 = vector.extract_strided_slice %28 {offsets = [0, 0], sizes = [1, 96], strides = [1, 1]} : vector<8x128xf32> to vector<1x96xf32>
    %30 = vector.extract_strided_slice %28 {offsets = [1, 0], sizes = [1, 32], strides = [1, 1]} : vector<8x128xf32> to vector<1x32xf32>
    %31 = vector.extract_strided_slice %28 {offsets = [2, 0], sizes = [1, 32], strides = [1, 1]} : vector<8x128xf32> to vector<1x32xf32>
    %32 = vector.extract_strided_slice %28 {offsets = [3, 0], sizes = [1, 32], strides = [1, 1]} : vector<8x128xf32> to vector<1x32xf32>
    %33 = vector.extract_strided_slice %28 {offsets = [4, 0], sizes = [1, 128], strides = [1, 1]} : vector<8x128xf32> to vector<1x128xf32>
    %34 = vector.extract_strided_slice %28 {offsets = [5, 0], sizes = [1, 32], strides = [1, 1]} : vector<8x128xf32> to vector<1x32xf32>
    %35 = vector.extract_strided_slice %28 {offsets = [6, 0], sizes = [1, 32], strides = [1, 1]} : vector<8x128xf32> to vector<1x32xf32>
    %36 = vector.extract_strided_slice %28 {offsets = [7, 0], sizes = [1, 32], strides = [1, 1]} : vector<8x128xf32> to vector<1x32xf32>
    %37 = arith.truncf %25 : vector<8x32xf32> to vector<8x32xbf16>
    %c0_13 = arith.constant 0 : index
    %c0_14 = arith.constant 0 : index
    %c0_15 = arith.constant 0 : index
    %38 = vector.load %arg3[%c0_13, %c0_14, %c0_15] : memref<2x32x96xbf16, #tpu.memory_space<vmem>>, vector<1x32x96xbf16>
    %39 = vector.shape_cast %38 : vector<1x32x96xbf16> to vector<32x96xbf16>
    %cst_16 = arith.constant dense<0.000000e+00> : vector<8x96xf32>
    %40 = tpu.matmul %37, %39, %cst_16 {dimension_numbers = #tpu.dot_dimension_numbers<[1], [0], [0], [1], [0, 0, 1, 1], [], []>} : vector<8x32xbf16>, vector<32x96xbf16>, vector<8x96xf32> -> vector<8x96xf32>
    %41 = vector.broadcast %29 : vector<1x96xf32> to vector<8x96xf32>
    %42 = arith.addf %40, %41 : vector<8x96xf32>
    %43 = arith.truncf %42 : vector<8x96xf32> to vector<8x96xbf16>
    %44 = vector.extract_strided_slice %43 {offsets = [0, 0], sizes = [8, 32], strides = [1, 1]} : vector<8x96xbf16> to vector<8x32xbf16>
    %45 = vector.shape_cast %44 : vector<8x32xbf16> to vector<8x4x8xbf16>
    %46 = tpu.transpose %45, [1, 0, 2] : vector<8x4x8xbf16> -> vector<4x8x8xbf16>
    %47 = vector.extract_strided_slice %43 {offsets = [0, 32], sizes = [8, 32], strides = [1, 1]} : vector<8x96xbf16> to vector<8x32xbf16>
    %48 = vector.shape_cast %47 : vector<8x32xbf16> to vector<8x4x8xbf16>
    %49 = tpu.transpose %48, [1, 0, 2] : vector<8x4x8xbf16> -> vector<4x8x8xbf16>
    %50 = vector.extract_strided_slice %43 {offsets = [0, 64], sizes = [8, 32], strides = [1, 1]} : vector<8x96xbf16> to vector<8x32xbf16>
    %51 = vector.shape_cast %50 : vector<8x32xbf16> to vector<8x4x8xbf16>
    %52 = tpu.transpose %51, [1, 0, 2] : vector<8x4x8xbf16> -> vector<4x8x8xbf16>
    "tpu.trace_start"() <{level = 10 : i32, message = "hqd,hkd->hqk"}> : () -> ()
    %cst_17 = arith.constant dense<0.000000e+00> : vector<4x8x8xf32>
    %53 = tpu.matmul %46, %49, %cst_17 {dimension_numbers = #tpu.dot_dimension_numbers<[2], [2], [1], [1], [0, 0, 0, 1, 1, 1], [0], [0]>} : vector<4x8x8xbf16>, vector<4x8x8xbf16>, vector<4x8x8xf32> -> vector<4x8x8xf32>
    "tpu.trace_stop"() : () -> ()
    %54 = vector.broadcast %26 : vector<1x1x8xf32> to vector<4x8x8xf32>
    %55 = arith.addf %53, %54 : vector<4x8x8xf32>
    %cst_18 = arith.constant dense<0xFF800000> : vector<4x8xf32>
    %56 = vector.multi_reduction <maximumf>, %55, %cst_18 [2] : vector<4x8x8xf32> to vector<4x8xf32>
    %57 = vector.shape_cast %56 : vector<4x8xf32> to vector<4x8x1xf32>
    %58 = vector.broadcast %57 : vector<4x8x1xf32> to vector<4x8x8xf32>
    %59 = arith.subf %55, %58 : vector<4x8x8xf32>
    %60 = math.exp %59 : vector<4x8x8xf32>
    %cst_19 = arith.constant dense<0.000000e+00> : vector<4x8xf32>
    %61 = vector.multi_reduction <add>, %60, %cst_19 [2] : vector<4x8x8xf32> to vector<4x8xf32>
    %62 = vector.shape_cast %61 : vector<4x8xf32> to vector<4x8x1xf32>
    %63 = tpu.reciprocal %62 {approx = true} : vector<4x8x1xf32> -> vector<4x8x1xf32>
    %64 = vector.broadcast %63 : vector<4x8x1xf32> to vector<4x8x8xf32>
    %65 = arith.mulf %60, %64 : vector<4x8x8xf32>
    %66 = arith.truncf %65 : vector<4x8x8xf32> to vector<4x8x8xbf16>
    "tpu.trace_start"() <{level = 10 : i32, message = "hqk,hkd->hqd"}> : () -> ()
    %cst_20 = arith.constant dense<0.000000e+00> : vector<4x8x8xf32>
    %67 = tpu.matmul %66, %52, %cst_20 {dimension_numbers = #tpu.dot_dimension_numbers<[2], [1], [1], [2], [0, 0, 0, 1, 1, 2], [0], [0]>} : vector<4x8x8xbf16>, vector<4x8x8xbf16>, vector<4x8x8xf32> -> vector<4x8x8xf32>
    "tpu.trace_stop"() : () -> ()
    %68 = tpu.transpose %67, [1, 0, 2] : vector<4x8x8xf32> -> vector<8x4x8xf32>
    %69 = vector.shape_cast %68 : vector<8x4x8xf32> to vector<8x32xf32>
    %70 = arith.truncf %69 : vector<8x32xf32> to vector<8x32xbf16>
    %c0_21 = arith.constant 0 : index
    %c0_22 = arith.constant 0 : index
    %c0_23 = arith.constant 0 : index
    %71 = vector.load %arg4[%c0_21, %c0_22, %c0_23] : memref<2x32x32xbf16, #tpu.memory_space<vmem>>, vector<1x32x32xbf16>
    %72 = vector.shape_cast %71 : vector<1x32x32xbf16> to vector<32x32xbf16>
    %cst_24 = arith.constant dense<0.000000e+00> : vector<8x32xf32>
    %73 = tpu.matmul %70, %72, %cst_24 {dimension_numbers = #tpu.dot_dimension_numbers<[1], [0], [0], [1], [0, 0, 1, 1], [], []>} : vector<8x32xbf16>, vector<32x32xbf16>, vector<8x32xf32> -> vector<8x32xf32>
    %74 = vector.broadcast %30 : vector<1x32xf32> to vector<8x32xf32>
    %75 = arith.addf %73, %74 : vector<8x32xf32>
    %76 = arith.addf %25, %75 : vector<8x32xf32>
    %cst_25 = arith.constant dense<0.000000e+00> : vector<8xf32>
    %77 = vector.multi_reduction <add>, %76, %cst_25 [1] : vector<8x32xf32> to vector<8xf32>
    %78 = vector.shape_cast %77 : vector<8xf32> to vector<8x1xf32>
    %cst_26 = arith.constant 3.200000e+01 : f32
    %79 = vector.broadcast %cst_26 : f32 to vector<8x1xf32>
    %80 = arith.divf %78, %79 : vector<8x1xf32>
    %81 = vector.broadcast %80 : vector<8x1xf32> to vector<8x32xf32>
    %82 = arith.subf %76, %81 : vector<8x32xf32>
    %83 = arith.mulf %82, %82 : vector<8x32xf32>
    %cst_27 = arith.constant dense<0.000000e+00> : vector<8xf32>
    %84 = vector.multi_reduction <add>, %83, %cst_27 [1] : vector<8x32xf32> to vector<8xf32>
    %85 = vector.shape_cast %84 : vector<8xf32> to vector<8x1xf32>
    %cst_28 = arith.constant 3.200000e+01 : f32
    %86 = vector.broadcast %cst_28 : f32 to vector<8x1xf32>
    %87 = arith.divf %85, %86 : vector<8x1xf32>
    %88 = vector.broadcast %80 : vector<8x1xf32> to vector<8x32xf32>
    %89 = arith.subf %76, %88 : vector<8x32xf32>
    %cst_29 = arith.constant 9.99999996E-13 : f32
    %90 = vector.broadcast %cst_29 : f32 to vector<8x1xf32>
    %91 = arith.addf %87, %90 : vector<8x1xf32>
    %92 = math.rsqrt %91 : vector<8x1xf32>
    %93 = vector.broadcast %92 : vector<8x1xf32> to vector<8x32xf32>
    %94 = arith.mulf %89, %93 : vector<8x32xf32>
    %95 = vector.broadcast %31 : vector<1x32xf32> to vector<8x32xf32>
    %96 = arith.mulf %94, %95 : vector<8x32xf32>
    %97 = vector.broadcast %32 : vector<1x32xf32> to vector<8x32xf32>
    %98 = arith.addf %96, %97 : vector<8x32xf32>
    %99 = arith.truncf %98 : vector<8x32xf32> to vector<8x32xbf16>
    %c0_30 = arith.constant 0 : index
    %c0_31 = arith.constant 0 : index
    %c0_32 = arith.constant 0 : index
    %100 = vector.load %arg5[%c0_30, %c0_31, %c0_32] : memref<2x32x128xbf16, #tpu.memory_space<vmem>>, vector<1x32x128xbf16>
    %101 = vector.shape_cast %100 : vector<1x32x128xbf16> to vector<32x128xbf16>
    %cst_33 = arith.constant dense<0.000000e+00> : vector<8x128xf32>
    %102 = tpu.matmul %99, %101, %cst_33 {dimension_numbers = #tpu.dot_dimension_numbers<[1], [0], [0], [1], [0, 0, 1, 1], [], []>} : vector<8x32xbf16>, vector<32x128xbf16>, vector<8x128xf32> -> vector<8x128xf32>
    %103 = vector.broadcast %33 : vector<1x128xf32> to vector<8x128xf32>
    %104 = arith.addf %102, %103 : vector<8x128xf32>
    %cst_34 = arith.constant 5.000000e-01 : f32
    %105 = vector.broadcast %cst_34 : f32 to vector<8x128xf32>
    %106 = arith.mulf %105, %104 : vector<8x128xf32>
    %cst_35 = arith.constant 4.471500e-02 : f32
    %107 = vector.broadcast %cst_35 : f32 to vector<8x128xf32>
    %108 = arith.mulf %107, %104 : vector<8x128xf32>
    %109 = arith.mulf %108, %104 : vector<8x128xf32>
    %110 = arith.mulf %109, %104 : vector<8x128xf32>
    %111 = arith.addf %104, %110 : vector<8x128xf32>
    %cst_36 = arith.constant 0.797884583 : f32
    %112 = vector.broadcast %cst_36 : f32 to vector<8x128xf32>
    %113 = arith.mulf %112, %111 : vector<8x128xf32>
    %114 = math.tanh %113 : vector<8x128xf32>
    %cst_37 = arith.constant 1.000000e+00 : f32
    %115 = vector.broadcast %cst_37 : f32 to vector<8x128xf32>
    %116 = arith.addf %115, %114 : vector<8x128xf32>
    %117 = arith.mulf %106, %116 : vector<8x128xf32>
    %118 = arith.truncf %117 : vector<8x128xf32> to vector<8x128xbf16>
    %c0_38 = arith.constant 0 : index
    %c0_39 = arith.constant 0 : index
    %c0_40 = arith.constant 0 : index
    %119 = vector.load %arg6[%c0_38, %c0_39, %c0_40] : memref<2x128x32xbf16, #tpu.memory_space<vmem>>, vector<1x128x32xbf16>
    %120 = vector.shape_cast %119 : vector<1x128x32xbf16> to vector<128x32xbf16>
    %cst_41 = arith.constant dense<0.000000e+00> : vector<8x32xf32>
    %121 = tpu.matmul %118, %120, %cst_41 {dimension_numbers = #tpu.dot_dimension_numbers<[1], [0], [0], [1], [0, 0, 1, 1], [], []>} : vector<8x128xbf16>, vector<128x32xbf16>, vector<8x32xf32> -> vector<8x32xf32>
    %122 = vector.broadcast %34 : vector<1x32xf32> to vector<8x32xf32>
    %123 = arith.addf %121, %122 : vector<8x32xf32>
    %124 = arith.addf %98, %123 : vector<8x32xf32>
    %cst_42 = arith.constant dense<0.000000e+00> : vector<8xf32>
    %125 = vector.multi_reduction <add>, %124, %cst_42 [1] : vector<8x32xf32> to vector<8xf32>
    %126 = vector.shape_cast %125 : vector<8xf32> to vector<8x1xf32>
    %cst_43 = arith.constant 3.200000e+01 : f32
    %127 = vector.broadcast %cst_43 : f32 to vector<8x1xf32>
    %128 = arith.divf %126, %127 : vector<8x1xf32>
    %129 = vector.broadcast %128 : vector<8x1xf32> to vector<8x32xf32>
    %130 = arith.subf %124, %129 : vector<8x32xf32>
    %131 = arith.mulf %130, %130 : vector<8x32xf32>
    %cst_44 = arith.constant dense<0.000000e+00> : vector<8xf32>
    %132 = vector.multi_reduction <add>, %131, %cst_44 [1] : vector<8x32xf32> to vector<8xf32>
    %133 = vector.shape_cast %132 : vector<8xf32> to vector<8x1xf32>
    %cst_45 = arith.constant 3.200000e+01 : f32
    %134 = vector.broadcast %cst_45 : f32 to vector<8x1xf32>
    %135 = arith.divf %133, %134 : vector<8x1xf32>
    %136 = vector.broadcast %128 : vector<8x1xf32> to vector<8x32xf32>
    %137 = arith.subf %124, %136 : vector<8x32xf32>
    %cst_46 = arith.constant 9.99999996E-13 : f32
    %138 = vector.broadcast %cst_46 : f32 to vector<8x1xf32>
    %139 = arith.addf %135, %138 : vector<8x1xf32>
    %140 = math.rsqrt %139 : vector<8x1xf32>
    %141 = vector.broadcast %140 : vector<8x1xf32> to vector<8x32xf32>
    %142 = arith.mulf %137, %141 : vector<8x32xf32>
    %143 = vector.broadcast %35 : vector<1x32xf32> to vector<8x32xf32>
    %144 = arith.mulf %142, %143 : vector<8x32xf32>
    %145 = vector.broadcast %36 : vector<1x32xf32> to vector<8x32xf32>
    %146 = arith.addf %144, %145 : vector<8x32xf32>
    %c1 = arith.constant 1 : index
    %c0_47 = arith.constant 0 : index
    %c0_48 = arith.constant 0 : index
    %147 = vector.load %arg7[%c1, %c0_47, %c0_48] : memref<2x8x128xf32, #tpu.memory_space<vmem>>, vector<1x8x128xf32>
    %148 = vector.shape_cast %147 : vector<1x8x128xf32> to vector<8x128xf32>
    %149 = vector.extract_strided_slice %148 {offsets = [0, 0], sizes = [1, 96], strides = [1, 1]} : vector<8x128xf32> to vector<1x96xf32>
    %150 = vector.extract_strided_slice %148 {offsets = [1, 0], sizes = [1, 32], strides = [1, 1]} : vector<8x128xf32> to vector<1x32xf32>
    %151 = vector.extract_strided_slice %148 {offsets = [2, 0], sizes = [1, 32], strides = [1, 1]} : vector<8x128xf32> to vector<1x32xf32>
    %152 = vector.extract_strided_slice %148 {offsets = [3, 0], sizes = [1, 32], strides = [1, 1]} : vector<8x128xf32> to vector<1x32xf32>
    %153 = vector.extract_strided_slice %148 {offsets = [4, 0], sizes = [1, 128], strides = [1, 1]} : vector<8x128xf32> to vector<1x128xf32>
    %154 = vector.extract_strided_slice %148 {offsets = [5, 0], sizes = [1, 32], strides = [1, 1]} : vector<8x128xf32> to vector<1x32xf32>
    %155 = vector.extract_strided_slice %148 {offsets = [6, 0], sizes = [1, 32], strides = [1, 1]} : vector<8x128xf32> to vector<1x32xf32>
    %156 = vector.extract_strided_slice %148 {offsets = [7, 0], sizes = [1, 32], strides = [1, 1]} : vector<8x128xf32> to vector<1x32xf32>
    %157 = arith.truncf %146 : vector<8x32xf32> to vector<8x32xbf16>
    %c1_49 = arith.constant 1 : index
    %c0_50 = arith.constant 0 : index
    %c0_51 = arith.constant 0 : index
    %158 = vector.load %arg3[%c1_49, %c0_50, %c0_51] : memref<2x32x96xbf16, #tpu.memory_space<vmem>>, vector<1x32x96xbf16>
    %159 = vector.shape_cast %158 : vector<1x32x96xbf16> to vector<32x96xbf16>
    %cst_52 = arith.constant dense<0.000000e+00> : vector<8x96xf32>
    %160 = tpu.matmul %157, %159, %cst_52 {dimension_numbers = #tpu.dot_dimension_numbers<[1], [0], [0], [1], [0, 0, 1, 1], [], []>} : vector<8x32xbf16>, vector<32x96xbf16>, vector<8x96xf32> -> vector<8x96xf32>
    %161 = vector.broadcast %149 : vector<1x96xf32> to vector<8x96xf32>
    %162 = arith.addf %160, %161 : vector<8x96xf32>
    %163 = arith.truncf %162 : vector<8x96xf32> to vector<8x96xbf16>
    %164 = vector.extract_strided_slice %163 {offsets = [0, 0], sizes = [8, 32], strides = [1, 1]} : vector<8x96xbf16> to vector<8x32xbf16>
    %165 = vector.shape_cast %164 : vector<8x32xbf16> to vector<8x4x8xbf16>
    %166 = tpu.transpose %165, [1, 0, 2] : vector<8x4x8xbf16> -> vector<4x8x8xbf16>
    %167 = vector.extract_strided_slice %163 {offsets = [0, 32], sizes = [8, 32], strides = [1, 1]} : vector<8x96xbf16> to vector<8x32xbf16>
    %168 = vector.shape_cast %167 : vector<8x32xbf16> to vector<8x4x8xbf16>
    %169 = tpu.transpose %168, [1, 0, 2] : vector<8x4x8xbf16> -> vector<4x8x8xbf16>
    %170 = vector.extract_strided_slice %163 {offsets = [0, 64], sizes = [8, 32], strides = [1, 1]} : vector<8x96xbf16> to vector<8x32xbf16>
    %171 = vector.shape_cast %170 : vector<8x32xbf16> to vector<8x4x8xbf16>
    %172 = tpu.transpose %171, [1, 0, 2] : vector<8x4x8xbf16> -> vector<4x8x8xbf16>
    "tpu.trace_start"() <{level = 10 : i32, message = "hqd,hkd->hqk"}> : () -> ()
    %cst_53 = arith.constant dense<0.000000e+00> : vector<4x8x8xf32>
    %173 = tpu.matmul %166, %169, %cst_53 {dimension_numbers = #tpu.dot_dimension_numbers<[2], [2], [1], [1], [0, 0, 0, 1, 1, 1], [0], [0]>} : vector<4x8x8xbf16>, vector<4x8x8xbf16>, vector<4x8x8xf32> -> vector<4x8x8xf32>
    "tpu.trace_stop"() : () -> ()
    %174 = vector.broadcast %26 : vector<1x1x8xf32> to vector<4x8x8xf32>
    %175 = arith.addf %173, %174 : vector<4x8x8xf32>
    %cst_54 = arith.constant dense<0xFF800000> : vector<4x8xf32>
    %176 = vector.multi_reduction <maximumf>, %175, %cst_54 [2] : vector<4x8x8xf32> to vector<4x8xf32>
    %177 = vector.shape_cast %176 : vector<4x8xf32> to vector<4x8x1xf32>
    %178 = vector.broadcast %177 : vector<4x8x1xf32> to vector<4x8x8xf32>
    %179 = arith.subf %175, %178 : vector<4x8x8xf32>
    %180 = math.exp %179 : vector<4x8x8xf32>
    %cst_55 = arith.constant dense<0.000000e+00> : vector<4x8xf32>
    %181 = vector.multi_reduction <add>, %180, %cst_55 [2] : vector<4x8x8xf32> to vector<4x8xf32>
    %182 = vector.shape_cast %181 : vector<4x8xf32> to vector<4x8x1xf32>
    %183 = tpu.reciprocal %182 {approx = true} : vector<4x8x1xf32> -> vector<4x8x1xf32>
    %184 = vector.broadcast %183 : vector<4x8x1xf32> to vector<4x8x8xf32>
    %185 = arith.mulf %180, %184 : vector<4x8x8xf32>
    %186 = arith.truncf %185 : vector<4x8x8xf32> to vector<4x8x8xbf16>
    "tpu.trace_start"() <{level = 10 : i32, message = "hqk,hkd->hqd"}> : () -> ()
    %cst_56 = arith.constant dense<0.000000e+00> : vector<4x8x8xf32>
    %187 = tpu.matmul %186, %172, %cst_56 {dimension_numbers = #tpu.dot_dimension_numbers<[2], [1], [1], [2], [0, 0, 0, 1, 1, 2], [0], [0]>} : vector<4x8x8xbf16>, vector<4x8x8xbf16>, vector<4x8x8xf32> -> vector<4x8x8xf32>
    "tpu.trace_stop"() : () -> ()
    %188 = tpu.transpose %187, [1, 0, 2] : vector<4x8x8xf32> -> vector<8x4x8xf32>
    %189 = vector.shape_cast %188 : vector<8x4x8xf32> to vector<8x32xf32>
    %190 = arith.truncf %189 : vector<8x32xf32> to vector<8x32xbf16>
    %c1_57 = arith.constant 1 : index
    %c0_58 = arith.constant 0 : index
    %c0_59 = arith.constant 0 : index
    %191 = vector.load %arg4[%c1_57, %c0_58, %c0_59] : memref<2x32x32xbf16, #tpu.memory_space<vmem>>, vector<1x32x32xbf16>
    %192 = vector.shape_cast %191 : vector<1x32x32xbf16> to vector<32x32xbf16>
    %cst_60 = arith.constant dense<0.000000e+00> : vector<8x32xf32>
    %193 = tpu.matmul %190, %192, %cst_60 {dimension_numbers = #tpu.dot_dimension_numbers<[1], [0], [0], [1], [0, 0, 1, 1], [], []>} : vector<8x32xbf16>, vector<32x32xbf16>, vector<8x32xf32> -> vector<8x32xf32>
    %194 = vector.broadcast %150 : vector<1x32xf32> to vector<8x32xf32>
    %195 = arith.addf %193, %194 : vector<8x32xf32>
    %196 = arith.addf %146, %195 : vector<8x32xf32>
    %cst_61 = arith.constant dense<0.000000e+00> : vector<8xf32>
    %197 = vector.multi_reduction <add>, %196, %cst_61 [1] : vector<8x32xf32> to vector<8xf32>
    %198 = vector.shape_cast %197 : vector<8xf32> to vector<8x1xf32>
    %cst_62 = arith.constant 3.200000e+01 : f32
    %199 = vector.broadcast %cst_62 : f32 to vector<8x1xf32>
    %200 = arith.divf %198, %199 : vector<8x1xf32>
    %201 = vector.broadcast %200 : vector<8x1xf32> to vector<8x32xf32>
    %202 = arith.subf %196, %201 : vector<8x32xf32>
    %203 = arith.mulf %202, %202 : vector<8x32xf32>
    %cst_63 = arith.constant dense<0.000000e+00> : vector<8xf32>
    %204 = vector.multi_reduction <add>, %203, %cst_63 [1] : vector<8x32xf32> to vector<8xf32>
    %205 = vector.shape_cast %204 : vector<8xf32> to vector<8x1xf32>
    %cst_64 = arith.constant 3.200000e+01 : f32
    %206 = vector.broadcast %cst_64 : f32 to vector<8x1xf32>
    %207 = arith.divf %205, %206 : vector<8x1xf32>
    %208 = vector.broadcast %200 : vector<8x1xf32> to vector<8x32xf32>
    %209 = arith.subf %196, %208 : vector<8x32xf32>
    %cst_65 = arith.constant 9.99999996E-13 : f32
    %210 = vector.broadcast %cst_65 : f32 to vector<8x1xf32>
    %211 = arith.addf %207, %210 : vector<8x1xf32>
    %212 = math.rsqrt %211 : vector<8x1xf32>
    %213 = vector.broadcast %212 : vector<8x1xf32> to vector<8x32xf32>
    %214 = arith.mulf %209, %213 : vector<8x32xf32>
    %215 = vector.broadcast %151 : vector<1x32xf32> to vector<8x32xf32>
    %216 = arith.mulf %214, %215 : vector<8x32xf32>
    %217 = vector.broadcast %152 : vector<1x32xf32> to vector<8x32xf32>
    %218 = arith.addf %216, %217 : vector<8x32xf32>
    %219 = arith.truncf %218 : vector<8x32xf32> to vector<8x32xbf16>
    %c1_66 = arith.constant 1 : index
    %c0_67 = arith.constant 0 : index
    %c0_68 = arith.constant 0 : index
    %220 = vector.load %arg5[%c1_66, %c0_67, %c0_68] : memref<2x32x128xbf16, #tpu.memory_space<vmem>>, vector<1x32x128xbf16>
    %221 = vector.shape_cast %220 : vector<1x32x128xbf16> to vector<32x128xbf16>
    %cst_69 = arith.constant dense<0.000000e+00> : vector<8x128xf32>
    %222 = tpu.matmul %219, %221, %cst_69 {dimension_numbers = #tpu.dot_dimension_numbers<[1], [0], [0], [1], [0, 0, 1, 1], [], []>} : vector<8x32xbf16>, vector<32x128xbf16>, vector<8x128xf32> -> vector<8x128xf32>
    %223 = vector.broadcast %153 : vector<1x128xf32> to vector<8x128xf32>
    %224 = arith.addf %222, %223 : vector<8x128xf32>
    %cst_70 = arith.constant 5.000000e-01 : f32
    %225 = vector.broadcast %cst_70 : f32 to vector<8x128xf32>
    %226 = arith.mulf %225, %224 : vector<8x128xf32>
    %cst_71 = arith.constant 4.471500e-02 : f32
    %227 = vector.broadcast %cst_71 : f32 to vector<8x128xf32>
    %228 = arith.mulf %227, %224 : vector<8x128xf32>
    %229 = arith.mulf %228, %224 : vector<8x128xf32>
    %230 = arith.mulf %229, %224 : vector<8x128xf32>
    %231 = arith.addf %224, %230 : vector<8x128xf32>
    %cst_72 = arith.constant 0.797884583 : f32
    %232 = vector.broadcast %cst_72 : f32 to vector<8x128xf32>
    %233 = arith.mulf %232, %231 : vector<8x128xf32>
    %234 = math.tanh %233 : vector<8x128xf32>
    %cst_73 = arith.constant 1.000000e+00 : f32
    %235 = vector.broadcast %cst_73 : f32 to vector<8x128xf32>
    %236 = arith.addf %235, %234 : vector<8x128xf32>
    %237 = arith.mulf %226, %236 : vector<8x128xf32>
    %238 = arith.truncf %237 : vector<8x128xf32> to vector<8x128xbf16>
    %c1_74 = arith.constant 1 : index
    %c0_75 = arith.constant 0 : index
    %c0_76 = arith.constant 0 : index
    %239 = vector.load %arg6[%c1_74, %c0_75, %c0_76] : memref<2x128x32xbf16, #tpu.memory_space<vmem>>, vector<1x128x32xbf16>
    %240 = vector.shape_cast %239 : vector<1x128x32xbf16> to vector<128x32xbf16>
    %cst_77 = arith.constant dense<0.000000e+00> : vector<8x32xf32>
    %241 = tpu.matmul %238, %240, %cst_77 {dimension_numbers = #tpu.dot_dimension_numbers<[1], [0], [0], [1], [0, 0, 1, 1], [], []>} : vector<8x128xbf16>, vector<128x32xbf16>, vector<8x32xf32> -> vector<8x32xf32>
    %242 = vector.broadcast %154 : vector<1x32xf32> to vector<8x32xf32>
    %243 = arith.addf %241, %242 : vector<8x32xf32>
    %244 = arith.addf %218, %243 : vector<8x32xf32>
    %cst_78 = arith.constant dense<0.000000e+00> : vector<8xf32>
    %245 = vector.multi_reduction <add>, %244, %cst_78 [1] : vector<8x32xf32> to vector<8xf32>
    %246 = vector.shape_cast %245 : vector<8xf32> to vector<8x1xf32>
    %cst_79 = arith.constant 3.200000e+01 : f32
    %247 = vector.broadcast %cst_79 : f32 to vector<8x1xf32>
    %248 = arith.divf %246, %247 : vector<8x1xf32>
    %249 = vector.broadcast %248 : vector<8x1xf32> to vector<8x32xf32>
    %250 = arith.subf %244, %249 : vector<8x32xf32>
    %251 = arith.mulf %250, %250 : vector<8x32xf32>
    %cst_80 = arith.constant dense<0.000000e+00> : vector<8xf32>
    %252 = vector.multi_reduction <add>, %251, %cst_80 [1] : vector<8x32xf32> to vector<8xf32>
    %253 = vector.shape_cast %252 : vector<8xf32> to vector<8x1xf32>
    %cst_81 = arith.constant 3.200000e+01 : f32
    %254 = vector.broadcast %cst_81 : f32 to vector<8x1xf32>
    %255 = arith.divf %253, %254 : vector<8x1xf32>
    %256 = vector.broadcast %248 : vector<8x1xf32> to vector<8x32xf32>
    %257 = arith.subf %244, %256 : vector<8x32xf32>
    %cst_82 = arith.constant 9.99999996E-13 : f32
    %258 = vector.broadcast %cst_82 : f32 to vector<8x1xf32>
    %259 = arith.addf %255, %258 : vector<8x1xf32>
    %260 = math.rsqrt %259 : vector<8x1xf32>
    %261 = vector.broadcast %260 : vector<8x1xf32> to vector<8x32xf32>
    %262 = arith.mulf %257, %261 : vector<8x32xf32>
    %263 = vector.broadcast %155 : vector<1x32xf32> to vector<8x32xf32>
    %264 = arith.mulf %262, %263 : vector<8x32xf32>
    %265 = vector.broadcast %156 : vector<1x32xf32> to vector<8x32xf32>
    %266 = arith.addf %264, %265 : vector<8x32xf32>
    %267 = vector.extract_strided_slice %266 {offsets = [0, 0], sizes = [1, 32], strides = [1, 1]} : vector<8x32xf32> to vector<1x32xf32>
    %268 = arith.truncf %267 : vector<1x32xf32> to vector<1x32xbf16>
    %c0_83 = arith.constant 0 : index
    %c0_84 = arith.constant 0 : index
    %269 = vector.load %arg9[%c0_83, %c0_84] : memref<32x32xbf16, #tpu.memory_space<vmem>>, vector<32x32xbf16>
    %cst_85 = arith.constant dense<0.000000e+00> : vector<1x32xf32>
    %270 = tpu.matmul %268, %269, %cst_85 {dimension_numbers = #tpu.dot_dimension_numbers<[1], [0], [0], [1], [0, 0, 1, 1], [], []>} : vector<1x32xbf16>, vector<32x32xbf16>, vector<1x32xf32> -> vector<1x32xf32>
    %271 = vector.extract_strided_slice %0 {offsets = [2, 0], sizes = [1, 32], strides = [1, 1]} : vector<8x128xf32> to vector<1x32xf32>
    %272 = arith.addf %270, %271 : vector<1x32xf32>
    %cst_86 = arith.constant 0.000000e+00 : f32
    %273 = vector.broadcast %cst_86 : f32 to vector<1x32xf32>
    %274 = arith.maximumf %272, %273 : vector<1x32xf32>
    %275 = arith.truncf %274 : vector<1x32xf32> to vector<1x32xbf16>
    %c0_87 = arith.constant 0 : index
    %c0_88 = arith.constant 0 : index
    %276 = vector.load %arg10[%c0_87, %c0_88] : memref<32x2xbf16, #tpu.memory_space<vmem>>, vector<32x2xbf16>
    %cst_89 = arith.constant dense<0.000000e+00> : vector<1x2xf32>
    %277 = tpu.matmul %275, %276, %cst_89 {dimension_numbers = #tpu.dot_dimension_numbers<[1], [0], [0], [1], [0, 0, 1, 1], [], []>} : vector<1x32xbf16>, vector<32x2xbf16>, vector<1x2xf32> -> vector<1x2xf32>
    %278 = vector.extract_strided_slice %0 {offsets = [3, 0], sizes = [1, 2], strides = [1, 1]} : vector<8x128xf32> to vector<1x2xf32>
    %279 = arith.addf %277, %278 : vector<1x2xf32>
    %280 = vector.shape_cast %279 : vector<1x2xf32> to vector<1x1x2xf32>
    %c0_90 = arith.constant 0 : index
    %c0_91 = arith.constant 0 : index
    %c0_92 = arith.constant 0 : index
    %281 = vector.load %arg11[%c0_90, %c0_91, %c0_92] : memref<1x1x2xf32, #tpu.memory_space<vmem>>, vector<1x1x2xf32>
    tpu.vector_store %arg11[%c0_90, %c0_91, %c0_92], %280 {strides = array<i32>} : memref<1x1x2xf32, #tpu.memory_space<vmem>>, vector<1x1x2xf32>,
    return
  }
  func.func @transform_0(%arg0: i32) -> (i32, i32) {
    %c0_i32 = arith.constant 0 : i32
    %c0_i32_0 = arith.constant 0 : i32
    return %arg0, %c0_i32 : i32, i32
  }
  func.func @transform_1(%arg0: i32) -> (i32, i32, i32) {
    %c0_i32 = arith.constant 0 : i32
    %c0_i32_0 = arith.constant 0 : i32
    %c0_i32_1 = arith.constant 0 : i32
    return %arg0, %c0_i32, %c0_i32_0 : i32, i32, i32
  }
  func.func @transform_2(%arg0: i32) -> (i32, i32, i32) {
    %c0_i32 = arith.constant 0 : i32
    %c0_i32_0 = arith.constant 0 : i32
    %c0_i32_1 = arith.constant 0 : i32
    %c0_i32_2 = arith.constant 0 : i32
    return %c0_i32, %c0_i32_0, %c0_i32_1 : i32, i32, i32
  }
  func.func @transform_3(%arg0: i32) -> (i32, i32, i32) {
    %c0_i32 = arith.constant 0 : i32
    %c0_i32_0 = arith.constant 0 : i32
    %c0_i32_1 = arith.constant 0 : i32
    %c0_i32_2 = arith.constant 0 : i32
    return %c0_i32, %c0_i32_0, %c0_i32_1 : i32, i32, i32
  }
  func.func @transform_4(%arg0: i32) -> (i32, i32, i32) {
    %c0_i32 = arith.constant 0 : i32
    %c0_i32_0 = arith.constant 0 : i32
    %c0_i32_1 = arith.constant 0 : i32
    %c0_i32_2 = arith.constant 0 : i32
    return %c0_i32, %c0_i32_0, %c0_i32_1 : i32, i32, i32
  }
  func.func @transform_5(%arg0: i32) -> (i32, i32, i32) {
    %c0_i32 = arith.constant 0 : i32
    %c0_i32_0 = arith.constant 0 : i32
    %c0_i32_1 = arith.constant 0 : i32
    %c0_i32_2 = arith.constant 0 : i32
    return %c0_i32, %c0_i32_0, %c0_i32_1 : i32, i32, i32
  }
  func.func @transform_6(%arg0: i32) -> (i32, i32, i32) {
    %c0_i32 = arith.constant 0 : i32
    %c0_i32_0 = arith.constant 0 : i32
    %c0_i32_1 = arith.constant 0 : i32
    %c0_i32_2 = arith.constant 0 : i32
    return %c0_i32, %c0_i32_0, %c0_i32_1 : i32, i32, i32
  }
  func.func @transform_7(%arg0: i32) -> (i32, i32) {
    %c0_i32 = arith.constant 0 : i32
    %c0_i32_0 = arith.constant 0 : i32
    %c0_i32_1 = arith.constant 0 : i32
    return %c0_i32, %c0_i32_0 : i32, i32
  }
  func.func @transform_8(%arg0: i32) -> (i32, i32) {
    %c0_i32 = arith.constant 0 : i32
    %c0_i32_0 = arith.constant 0 : i32
    %c0_i32_1 = arith.constant 0 : i32
    return %c0_i32, %c0_i32_0 : i32, i32
  }
  func.func @transform_9(%arg0: i32) -> (i32, i32) {
    %c0_i32 = arith.constant 0 : i32
    %c0_i32_0 = arith.constant 0 : i32
    %c0_i32_1 = arith.constant 0 : i32
    return %c0_i32, %c0_i32_0 : i32, i32
  }
  func.func @transform_10(%arg0: i32) -> (i32, i32, i32) {
    %c0_i32 = arith.constant 0 : i32
    %c0_i32_0 = arith.constant 0 : i32
    %c0_i32_1 = arith.constant 0 : i32
    return %arg0, %c0_i32, %c0_i32_0 : i32, i32, i32
  }
}

</mosaic_0001>

<llo_original>
// kernel: tpu_custom_call.1
$region0: #{tpu_custom_call.1}
  #allocation0 [shape = 'u32[]', space=smem, size = 0x4, offset = 0x4, fixed_abs, tag = 'smem constant byte address 0x4 - core index']
  #allocation1 [shape = 'u32[72,128]{1,0:T(1,128)}', space=vmem, size = 0x9000, scoped, tag = 'internal scratch']
  %s0 = inlined_call_operand.vmem [shape: f32[16,32], index: 0, kind: input, shape index: {}]
  %s1 = inlined_call_operand.vmem [shape: f32[2,1,8], index: 1, kind: input, shape index: {}]
  %s2 = inlined_call_operand.vmem [shape: bf16[2,32,96], index: 2, kind: input, shape index: {}]
  %s3 = inlined_call_operand.vmem [shape: bf16[2,32,32], index: 3, kind: input, shape index: {}]
  %s4 = inlined_call_operand.vmem [shape: bf16[2,32,128], index: 4, kind: input, shape index: {}]
  %s5 = inlined_call_operand.vmem [shape: bf16[2,128,32], index: 5, kind: input, shape index: {}]
  %s6 = inlined_call_operand.vmem [shape: f32[2,8,128], index: 6, kind: input, shape index: {}]
  %s7 = inlined_call_operand.vmem [shape: f32[8,128], index: 7, kind: input, shape index: {}]
  %s8 = inlined_call_operand.vmem [shape: bf16[32,32], index: 8, kind: input, shape index: {}]
  %s9 = inlined_call_operand.vmem [shape: bf16[32,2], index: 9, kind: input, shape index: {}]
  %s10 = inlined_call_operand.hbm [shape: f32[2,1,2], index: 10, kind: output, shape index: {}]
  %s11 = sld [smem:[#allocation0]]
  $region73: #{tpu_custom_call.1} parent=0
    _
  %s13 = ssub.s32 1, %s11
  %s14 = scalar_select 0, %s13, %s11
  $region1: #{tpu_custom_call.1} parent=0
    #allocation2 [shape = 'u8[1024]{0}', space=vmem, size = 0x400, scoped, tag = 'output window, operand 0']
    #allocation3 [shape = 's32[2]{0}', space=sflag, size = 0x8, scoped, tag = 'scoped memory for tpu_custom_call.1']
    %15 = vsyncpa [#allocation3], 0
    %s16 = scalar_lea.sflag [#allocation3], 1
    %17 = vsyncpa %s16, 0
    loop: start=0, step=1, limit=4
    $region2: #{tpu_custom_call.1} parent=1 // loop_pre_header
      _
    $region3: #{tpu_custom_call.1} parent=1 // loop_header
      %s19 = sphi 0, %s23
      %p20 = scmp.ge.s32.totalorder %s19, 4
      %s29 = sphi 0, %s31
      %s32 = sphi 0, %s29
      %s33 = sphi 0, %s32
      %s49 = sphi 0, %s33
      %s55 = sphi 0, %s57
      %s58 = sphi 0, %s55
      %s59 = sphi 0, %s58
      %s75 = sphi 0, %s59
      %s79 = sphi 0, %s79
      %s81 = sphi 0, %s79
      %s82 = sphi 0, %s81
      %s96 = sphi 0, %s82
      %s100 = sphi 0, %s100
      %s102 = sphi 0, %s100
      %s103 = sphi 0, %s102
      %s117 = sphi 0, %s103
      %s121 = sphi 0, %s121
      %s123 = sphi 0, %s121
      %s124 = sphi 0, %s123
      %s138 = sphi 0, %s124
      %s142 = sphi 0, %s142
      %s144 = sphi 0, %s142
      %s145 = sphi 0, %s144
      %s159 = sphi 0, %s145
      %s163 = sphi 0, %s163
      %s165 = sphi 0, %s163
      %s166 = sphi 0, %s165
      %s180 = sphi 0, %s166
      %s184 = sphi 0, %s184
      %s186 = sphi 0, %s184
      %s187 = sphi 0, %s186
      %s201 = sphi 0, %s187
      %s205 = sphi 0, %s205
      %s207 = sphi 0, %s205
      %s208 = sphi 0, %s207
      %s222 = sphi 0, %s208
      %s226 = sphi 0, %s226
      %s228 = sphi 0, %s226
      %s229 = sphi 0, %s228
      %s243 = sphi 0, %s229
      %s249 = sphi 0, %s251
      %s252 = sphi 0, %s249
      %s253 = sphi 0, %s252
      %s269 = sphi 0, %s253
    $region4: #{tpu_custom_call.1} parent=1 // loop_header_branch
      %22 = sbr.rel (%p20) target = $region8
    $region5: #{tpu_custom_call.1} parent=1 // loop_body
      %s24 = ssub.s32 %s19, 1
      %s25 = ssub.s32 %s19, 2
      %s26 = sadd.s32 %s19, 1
      %s27 = ssub.s32 %s19, %s26
      %p28 = scmp.eq.s32.totalorder %s27, 0
      %s30 = sadd.s32 %s29, 1
      %s31 = scalar_select %p28, %s29, %s30
      %p34 = pneg %p28
      %p35 = scmp.eq.s32.totalorder %s19, 1
      %p36 = por %p34, %p35
      %p37 = scmp.ne.s32.totalorder %s29, %s32
      %p38 = scmp.eq.s32.totalorder %s19, 0
      %p39 = por %p37, %p38
      %p40 = scmp.ne.s32.totalorder %s29, %s32
      %p41 = scmp.eq.s32.totalorder %s24, 1
      %p42 = por %p40, %p41
      %p43 = scmp.ne.s32.totalorder %s32, %s33
      %p44 = scmp.eq.s32.totalorder %s24, 0
      %p45 = por %p43, %p44
      %p46 = scmp.ne.s32.totalorder %s32, %s33
      %p47 = scmp.eq.s32.totalorder %s25, 1
      %p48 = por %p46, %p47
      %p50 = scmp.ne.s32.totalorder %s33, %s49
      %p51 = scmp.eq.s32.totalorder %s25, 0
      %p52 = por %p50, %p51
      %s53 = ssub.s32 %s19, %s26
      %p54 = scmp.eq.s32.totalorder %s53, 0
      %s56 = sadd.s32 %s55, 1
      %s57 = scalar_select %p54, %s55, %s56
      %p60 = pneg %p54
      %p61 = scmp.eq.s32.totalorder %s19, 1
      %p62 = por %p60, %p61
      %p63 = scmp.ne.s32.totalorder %s55, %s58
      %p64 = scmp.eq.s32.totalorder %s19, 0
      %p65 = por %p63, %p64
      %p66 = scmp.ne.s32.totalorder %s55, %s58
      %p67 = scmp.eq.s32.totalorder %s24, 1
      %p68 = por %p66, %p67
      %p69 = scmp.ne.s32.totalorder %s58, %s59
      %p70 = scmp.eq.s32.totalorder %s24, 0
      %p71 = por %p69, %p70
      %p72 = scmp.ne.s32.totalorder %s58, %s59
      %p73 = scmp.eq.s32.totalorder %s25, 1
      %p74 = por %p72, %p73
      %p76 = scmp.ne.s32.totalorder %s59, %s75
      %p77 = scmp.eq.s32.totalorder %s25, 0
      %p78 = por %p76, %p77
      %s80 = sadd.s32 %s79, 1
      %p83 = scmp.eq.s32.totalorder %s19, 1
      %p84 = scmp.ne.s32.totalorder %s79, %s81
      %p85 = scmp.eq.s32.totalorder %s19, 0
      %p86 = por %p84, %p85
      %p87 = scmp.ne.s32.totalorder %s79, %s81
      %p88 = scmp.eq.s32.totalorder %s24, 1
      %p89 = por %p87, %p88
      %p90 = scmp.ne.s32.totalorder %s81, %s82
      %p91 = scmp.eq.s32.totalorder %s24, 0
      %p92 = por %p90, %p91
      %p93 = scmp.ne.s32.totalorder %s81, %s82
      %p94 = scmp.eq.s32.totalorder %s25, 1
      %p95 = por %p93, %p94
      %p97 = scmp.ne.s32.totalorder %s82, %s96
      %p98 = scmp.eq.s32.totalorder %s25, 0
      %p99 = por %p97, %p98
      %s101 = sadd.s32 %s100, 1
      %p104 = scmp.eq.s32.totalorder %s19, 1
      %p105 = scmp.ne.s32.totalorder %s100, %s102
      %p106 = scmp.eq.s32.totalorder %s19, 0
      %p107 = por %p105, %p106
      %p108 = scmp.ne.s32.totalorder %s100, %s102
      %p109 = scmp.eq.s32.totalorder %s24, 1
      %p110 = por %p108, %p109
      %p111 = scmp.ne.s32.totalorder %s102, %s103
      %p112 = scmp.eq.s32.totalorder %s24, 0
      %p113 = por %p111, %p112
      %p114 = scmp.ne.s32.totalorder %s102, %s103
      %p115 = scmp.eq.s32.totalorder %s25, 1
      %p116 = por %p114, %p115
      %p118 = scmp.ne.s32.totalorder %s103, %s117
      %p119 = scmp.eq.s32.totalorder %s25, 0
      %p120 = por %p118, %p119
      %s122 = sadd.s32 %s121, 1
      %p125 = scmp.eq.s32.totalorder %s19, 1
      %p126 = scmp.ne.s32.totalorder %s121, %s123
      %p127 = scmp.eq.s32.totalorder %s19, 0
      %p128 = por %p126, %p127
      %p129 = scmp.ne.s32.totalorder %s121, %s123
      %p130 = scmp.eq.s32.totalorder %s24, 1
      %p131 = por %p129, %p130
      %p132 = scmp.ne.s32.totalorder %s123, %s124
      %p133 = scmp.eq.s32.totalorder %s24, 0
      %p134 = por %p132, %p133
      %p135 = scmp.ne.s32.totalorder %s123, %s124
      %p136 = scmp.eq.s32.totalorder %s25, 1
      %p137 = por %p135, %p136
      %p139 = scmp.ne.s32.totalorder %s124, %s138
      %p140 = scmp.eq.s32.totalorder %s25, 0
      %p141 = por %p139, %p140
      %s143 = sadd.s32 %s142, 1
      %p146 = scmp.eq.s32.totalorder %s19, 1
      %p147 = scmp.ne.s32.totalorder %s142, %s144
      %p148 = scmp.eq.s32.totalorder %s19, 0
      %p149 = por %p147, %p148
      %p150 = scmp.ne.s32.totalorder %s142, %s144
      %p151 = scmp.eq.s32.totalorder %s24, 1
      %p152 = por %p150, %p151
      %p153 = scmp.ne.s32.totalorder %s144, %s145
      %p154 = scmp.eq.s32.totalorder %s24, 0
      %p155 = por %p153, %p154
      %p156 = scmp.ne.s32.totalorder %s144, %s145
      %p157 = scmp.eq.s32.totalorder %s25, 1
      %p158 = por %p156, %p157
      %p160 = scmp.ne.s32.totalorder %s145, %s159
      %p161 = scmp.eq.s32.totalorder %s25, 0
      %p162 = por %p160, %p161
      %s164 = sadd.s32 %s163, 1
      %p167 = scmp.eq.s32.totalorder %s19, 1
      %p168 = scmp.ne.s32.totalorder %s163, %s165
      %p169 = scmp.eq.s32.totalorder %s19, 0
      %p170 = por %p168, %p169
      %p171 = scmp.ne.s32.totalorder %s163, %s165
      %p172 = scmp.eq.s32.totalorder %s24, 1
      %p173 = por %p171, %p172
      %p174 = scmp.ne.s32.totalorder %s165, %s166
      %p175 = scmp.eq.s32.totalorder %s24, 0
      %p176 = por %p174, %p175
      %p177 = scmp.ne.s32.totalorder %s165, %s166
      %p178 = scmp.eq.s32.totalorder %s25, 1
      %p179 = por %p177, %p178
      %p181 = scmp.ne.s32.totalorder %s166, %s180
      %p182 = scmp.eq.s32.totalorder %s25, 0
      %p183 = por %p181, %p182
      %s185 = sadd.s32 %s184, 1
      %p188 = scmp.eq.s32.totalorder %s19, 1
      %p189 = scmp.ne.s32.totalorder %s184, %s186
      %p190 = scmp.eq.s32.totalorder %s19, 0
      %p191 = por %p189, %p190
      %p192 = scmp.ne.s32.totalorder %s184, %s186
      %p193 = scmp.eq.s32.totalorder %s24, 1
      %p194 = por %p192, %p193
      %p195 = scmp.ne.s32.totalorder %s186, %s187
      %p196 = scmp.eq.s32.totalorder %s24, 0
      %p197 = por %p195, %p196
      %p198 = scmp.ne.s32.totalorder %s186, %s187
      %p199 = scmp.eq.s32.totalorder %s25, 1
      %p200 = por %p198, %p199
      %p202 = scmp.ne.s32.totalorder %s187, %s201
      %p203 = scmp.eq.s32.totalorder %s25, 0
      %p204 = por %p202, %p203
      %s206 = sadd.s32 %s205, 1
      %p209 = scmp.eq.s32.totalorder %s19, 1
      %p210 = scmp.ne.s32.totalorder %s205, %s207
      %p211 = scmp.eq.s32.totalorder %s19, 0
      %p212 = por %p210, %p211
      %p213 = scmp.ne.s32.totalorder %s205, %s207
      %p214 = scmp.eq.s32.totalorder %s24, 1
      %p215 = por %p213, %p214
      %p216 = scmp.ne.s32.totalorder %s207, %s208
      %p217 = scmp.eq.s32.totalorder %s24, 0
      %p218 = por %p216, %p217
      %p219 = scmp.ne.s32.totalorder %s207, %s208
      %p220 = scmp.eq.s32.totalorder %s25, 1
      %p221 = por %p219, %p220
      %p223 = scmp.ne.s32.totalorder %s208, %s222
      %p224 = scmp.eq.s32.totalorder %s25, 0
      %p225 = por %p223, %p224
      %s227 = sadd.s32 %s226, 1
      %p230 = scmp.eq.s32.totalorder %s19, 1
      %p231 = scmp.ne.s32.totalorder %s226, %s228
      %p232 = scmp.eq.s32.totalorder %s19, 0
      %p233 = por %p231, %p232
      %p234 = scmp.ne.s32.totalorder %s226, %s228
      %p235 = scmp.eq.s32.totalorder %s24, 1
      %p236 = por %p234, %p235
      %p237 = scmp.ne.s32.totalorder %s228, %s229
      %p238 = scmp.eq.s32.totalorder %s24, 0
      %p239 = por %p237, %p238
      %p240 = scmp.ne.s32.totalorder %s228, %s229
      %p241 = scmp.eq.s32.totalorder %s25, 1
      %p242 = por %p240, %p241
      %p244 = scmp.ne.s32.totalorder %s229, %s243
      %p245 = scmp.eq.s32.totalorder %s25, 0
      %p246 = por %p244, %p245
      %s247 = ssub.s32 %s19, %s26
      %p248 = scmp.eq.s32.totalorder %s247, 0
      %s250 = sadd.s32 %s249, 1
      %s251 = scalar_select %p248, %s249, %s250
      %p254 = pneg %p248
      %p255 = scmp.eq.s32.totalorder %s19, 1
      %p256 = por %p254, %p255
      %p257 = scmp.ne.s32.totalorder %s249, %s252
      %p258 = scmp.eq.s32.totalorder %s19, 0
      %p259 = por %p257, %p258
      %p260 = scmp.ne.s32.totalorder %s249, %s252
      %p261 = scmp.eq.s32.totalorder %s24, 1
      %p262 = por %p260, %p261
      %p263 = scmp.ne.s32.totalorder %s252, %s253
      %p264 = scmp.eq.s32.totalorder %s24, 0
      %p265 = por %p263, %p264
      %p266 = scmp.ne.s32.totalorder %s252, %s253
      %p267 = scmp.eq.s32.totalorder %s25, 1
      %p268 = por %p266, %p267
      %p270 = scmp.ne.s32.totalorder %s253, %s269
      %p271 = scmp.eq.s32.totalorder %s25, 0
      %p272 = por %p270, %p271
      %p273 = scmp.le.s32.totalorder 1, %s19
      %p274 = scmp.lt.s32.totalorder %s19, 3
      %p275 = pnand %p273, %p274
      %p276 = pneg %p275
      // Predicated region
      $region9: #{tpu_custom_call.1} parent=5 // pred_check
        _
      $region10: #{tpu_custom_call.1} parent=5 // pred_check_branch
        %278 = sbr.rel (%p275) target = $region12
      $region11: #{tpu_custom_call.1} parent=5 // pred_region
        %s279 = ssub.s32 %s19, 1
        // Predicated region
        $region13: #{tpu_custom_call.1} parent=11 // pred_check
          %p280 = pneg %p92
        $region14: #{tpu_custom_call.1} parent=11 // pred_check_branch
          %282 = sbr.rel (%p280) target = $region16
        $region15: #{tpu_custom_call.1} parent=11 // pred_region
          _
        $region16: #{tpu_custom_call.1} parent=11 // pred_fallthru
          _
        // Predicated region
        $region17: #{tpu_custom_call.1} parent=11 // pred_check
          %p283 = pneg %p113
        $region18: #{tpu_custom_call.1} parent=11 // pred_check_branch
          %285 = sbr.rel (%p283) target = $region20
        $region19: #{tpu_custom_call.1} parent=11 // pred_region
          _
        $region20: #{tpu_custom_call.1} parent=11 // pred_fallthru
          _
        // Predicated region
        $region21: #{tpu_custom_call.1} parent=11 // pred_check
          %p286 = pneg %p134
        $region22: #{tpu_custom_call.1} parent=11 // pred_check_branch
          %288 = sbr.rel (%p286) target = $region24
        $region23: #{tpu_custom_call.1} parent=11 // pred_region
          _
        $region24: #{tpu_custom_call.1} parent=11 // pred_fallthru
          _
        // Predicated region
        $region25: #{tpu_custom_call.1} parent=11 // pred_check
          %p289 = pneg %p155
        $region26: #{tpu_custom_call.1} parent=11 // pred_check_branch
          %291 = sbr.rel (%p289) target = $region28
        $region27: #{tpu_custom_call.1} parent=11 // pred_region
          _
        $region28: #{tpu_custom_call.1} parent=11 // pred_fallthru
          _
        // Predicated region
        $region29: #{tpu_custom_call.1} parent=11 // pred_check
          %p292 = pneg %p176
        $region30: #{tpu_custom_call.1} parent=11 // pred_check_branch
          %294 = sbr.rel (%p292) target = $region32
        $region31: #{tpu_custom_call.1} parent=11 // pred_region
          _
        $region32: #{tpu_custom_call.1} parent=11 // pred_fallthru
          _
        // Predicated region
        $region33: #{tpu_custom_call.1} parent=11 // pred_check
          %p295 = pneg %p197
        $region34: #{tpu_custom_call.1} parent=11 // pred_check_branch
          %297 = sbr.rel (%p295) target = $region36
        $region35: #{tpu_custom_call.1} parent=11 // pred_region
          _
        $region36: #{tpu_custom_call.1} parent=11 // pred_fallthru
          _
        // Predicated region
        $region37: #{tpu_custom_call.1} parent=11 // pred_check
          %p298 = pneg %p218
        $region38: #{tpu_custom_call.1} parent=11 // pred_check_branch
          %300 = sbr.rel (%p298) target = $region40
        $region39: #{tpu_custom_call.1} parent=11 // pred_region
          _
        $region40: #{tpu_custom_call.1} parent=11 // pred_fallthru
          _
        // Predicated region
        $region41: #{tpu_custom_call.1} parent=11 // pred_check
          %p301 = pneg %p239
        $region42: #{tpu_custom_call.1} parent=11 // pred_check_branch
          %303 = sbr.rel (%p301) target = $region44
        $region43: #{tpu_custom_call.1} parent=11 // pred_region
          _
        $region44: #{tpu_custom_call.1} parent=11 // pred_fallthru
          _
      $region12: #{tpu_custom_call.1} parent=5 // pred_fallthru
        _
      %p304 = scmp.lt.s32.totalorder %s19, 2
      // Predicated region
      $region45: #{tpu_custom_call.1} parent=5 // pred_check
        %p305 = pneg %p304
      $region46: #{tpu_custom_call.1} parent=5 // pred_check_branch
        %307 = sbr.rel (%p305) target = $region48
      $region47: #{tpu_custom_call.1} parent=5 // pred_region
        // Predicated region
        $region49: #{tpu_custom_call.1} parent=47 // pred_check
          %p308 = pneg %p39
        $region50: #{tpu_custom_call.1} parent=47 // pred_check_branch
          %310 = sbr.rel (%p308) target = $region52
        $region51: #{tpu_custom_call.1} parent=47 // pred_region
          %p311 = scmp.lt.s32.totalorder %s19, 1
          %s312 = scalar_select %p311, %s19, 1
          %s313 = smul.addr %s312, 8
          %s314 = scalar_lea.vmem %s0, %s313
        $region52: #{tpu_custom_call.1} parent=47 // pred_fallthru
          _
        // Predicated region
        $region53: #{tpu_custom_call.1} parent=47 // pred_check
          %p315 = pneg %p65
        $region54: #{tpu_custom_call.1} parent=47 // pred_check_branch
          %317 = sbr.rel (%p315) target = $region56
        $region55: #{tpu_custom_call.1} parent=47 // pred_region
          %p318 = scmp.lt.s32.totalorder %s19, 1
          %s319 = scalar_select %p318, %s19, 1
          %s320 = scalar_lea.vmem %s1, %s319
        $region56: #{tpu_custom_call.1} parent=47 // pred_fallthru
          _
      $region48: #{tpu_custom_call.1} parent=5 // pred_fallthru
        _
      %p321 = scmp.le.s32.totalorder 1, %s19
      %p322 = scmp.lt.s32.totalorder %s19, 3
      %p323 = pnand %p321, %p322
      %p324 = pneg %p323
      // Predicated region
      $region57: #{tpu_custom_call.1} parent=5 // pred_check
        _
      $region58: #{tpu_custom_call.1} parent=5 // pred_check_branch
        %326 = sbr.rel (%p323) target = $region60
      $region59: #{tpu_custom_call.1} parent=5 // pred_region
        %s327 = ssub.s32 %s19, 1
        %p328 = scmp.lt.s32.totalorder %s24, 1
        %s329 = scalar_select %p328, %s24, 1
        %s330 = smul.addr %s329, 8
        %s331 = scalar_lea.vmem %s0, %s330
        %p332 = pneg %p45
        %p333 = pneg %p42
        %p334 = scmp.lt.s32.totalorder %s24, 1
        %s335 = scalar_select %p334, %s24, 1
        %s336 = scalar_lea.vmem %s1, %s335
        %p337 = pneg %p71
        %p338 = pneg %p68
        %p339 = pneg %p92
        %p340 = pneg %p89
        %p341 = pneg %p113
        %p342 = pneg %p110
        %p343 = pneg %p134
        %p344 = pneg %p131
        %p345 = pneg %p155
        %p346 = pneg %p152
        %p347 = pneg %p176
        %p348 = pneg %p173
        %p349 = pneg %p197
        %p350 = pneg %p194
        %p351 = pneg %p218
        %p352 = pneg %p215
        %p353 = pneg %p239
        %p354 = pneg %p236
        %p355 = pneg %p265
        %p356 = pneg %p262
        %s357 = sand.u32 %s252, 1
        %s358 = scalar_lea.sflag [#allocation3], %s357
        %s359 = sand.u32 %s252, 1
        %s360 = scalar_lea.vmem [#allocation2], %s359
        %p361 = scmp.lt.s32.totalorder %s24, 1
        %s362 = scalar_select %p361, %s24, 1
        %s363 = smul.addr %s362, 8
        %s364 = scalar_lea.vmem %s0, %s363
        %p365 = scmp.lt.s32.totalorder %s24, 1
        %s366 = scalar_select %p365, %s24, 1
        %s367 = scalar_lea.vmem %s1, %s366
        %v369 = vld [vmem:[%s7] sm:$0xff]
        %v370 = vld [vmem:[%s364] sm:$0xff]
        %vm371 = vcmask 261120
        %v372 = vsel %vm371, %v370, 0.0
        %373 = vadd.xlane.f32.xlu0 %v372
        %v374 = vpop.xlane.xlu0 %373
        %v375 = vrcp.pop 32.0
        %v376 = vmul.f32 32.0, %v375
        %v377 = vsub.f32 1.0, %v376
        %v378 = vmul.f32 %v375, %v377
        %v379 = vadd.f32 %v375, %v378
        %vm380 = vweird.f32 %v375
        %v381 = vsel %vm380, %v375, %v379
        %v382 = vmul.f32 %v374, %v381
        %v383 = vsub.f32 %v370, %v382
        %v384 = vmul.f32 %v383, %v383
        %v385 = vsel %vm371, %v384, 0.0
        %386 = vadd.xlane.f32.xlu0 %v385
        %v387 = vpop.xlane.xlu0 %386
        %v388 = vmul.f32 %v387, %v381
        %v389 = vadd.f32 %v388, 1e-12
        %v390 = vrsqrt.pop %v389
        %v391 = vmul.f32 %v390, %v389
        %v392 = vmul.f32 %v391, %v390
        %v393 = vmul.f32 0.5, %v392
        %v394 = vsub.f32 1.5, %v393
        %v395 = vmul.f32 %v390, %v394
        %vm396 = vweird.f32 %v389
        %vm397 = vweird.f32 %v390
        %vm398 = vmor %vm396, %vm397
        %v399 = vsel %vm398, %v390, %v395
        %v400 = vmul.f32 %v383, %v399
        %v401 = vperm.slane %v369, 0
        %v402 = vmul.f32 %v400, %v401
        %v403 = vperm.slane %v369, 1
        %v404 = vadd.f32 %v402, %v403
        %v405 = vld [vmem:[%s367] sm:$0x1]
        %v406 = vld [vmem:[%s6] sm:$0xff]
        %v407 = vpack.c.bf16 %v404, %v404
        %v408 = vld [vmem:[%s2] sm:$0xf]
        %v409 = vld [vmem:[%s2 + $0x4] sm:$0xf]
        %v410 = vld [vmem:[%s2 + $0x8] sm:$0xf]
        %v411 = vld [vmem:[%s2 + $0xc] sm:$0xf]
        %v412 = vperm.slane %v406, 0
        %v417 = vunpack.c.l.b16 %v408
        %v418 = vunpack.c.l.b16 %v409
        %v419 = vunpack.c.l.b16 %v410
        %v420 = vunpack.c.l.b16 %v411
        %v421 = vpack.c.b16 %v418, %v417
        %v422 = vpack.c.b16 %v420, %v419
        %v426 = vsel %vm371, %v407, 0
        %428 = vmatpush.bf16.msra.mxu0 0
        %429 = vmatpush.bf16.msra.mxu0 0
        %430 = vmatpush.bf16.msra.mxu0 0
        %431 = vmatpush.bf16.msra.mxu0 0
        %432 = vmatpush.bf16.msra.mxu0 0
        %433 = vmatpush.bf16.msra.mxu0 0
        %434 = vmatpush.bf16.msra.mxu0 %v422
        %435 = vmatpush.bf16.msra.mxu0 %v421
        %436 = vmatmul.bf16.gmra.mxu0 %v426
        %v437 = vpop.f32.mrf.mxu0
        %v438 = vadd.f32 %v412, %v437
        %v439 = vpop.f32.mrf.mxu0
        %440 = vdwg.mxu0
        %v441 = vpack.c.bf16 %v438, %v438
        %443 = vrot.lane.b32.xlu0 %v441, 120
        %v444 = vpop.permute.xlu0 %443
        %445 = vrot.lane.b32.xlu0 %v441, 112
        %v446 = vpop.permute.xlu0 %445
        %447 = vrot.lane.b32.xlu0 %v441, 104
        %v448 = vpop.permute.xlu0 %447
        %v451 = vpack.i.b16 %v444, %v441
        %v452 = vshrl.u32 %v441, 16
        %v453 = vshrl.u32 %v444, 16
        %v454 = vpack.i.b16 %v453, %v452
        %v457 = vpack.i.b16 %v448, %v446
        %v458 = vshrl.u32 %v446, 16
        %v459 = vshrl.u32 %v448, 16
        %v460 = vpack.i.b16 %v459, %v458
        %v463 = vunpack.c.l.s4 1983009808
        %v464 = vunpack.c.0.s8 %v463
        %v465 = vperm.slane %v451, %v464
        %v468 = vunpack.c.l.s4 1983009808
        %v469 = vunpack.c.0.s8 %v468
        %v470 = vperm.slane %v457, %v469
        %v471 = vrot.slane %v470, 4
        %vm472 = vcmask 1047556
        %v473 = vsel %vm472, %v471, %v465
        %v474 = vrot.slane %v465, 4
        %v475 = vsel %vm472, %v470, %v474
        %v477 = vunpack.c.l.s4 1934713408
        %v478 = vunpack.c.0.s8 %v477
        %v479 = vperm.slane %v473, %v478
        %v481 = vunpack.c.l.s4 1934713408
        %v482 = vunpack.c.0.s8 %v481
        %v483 = vperm.slane %v475, %v482
        %v484 = vrot.slane %v479, 4
        %v485 = vsel %vm472, 0, %v484
        %v486 = vrot.slane %v483, 4
        %v487 = vsel %vm472, 0, %v486
        %v490 = vunpack.c.l.s4 1983009808
        %v491 = vunpack.c.0.s8 %v490
        %v492 = vperm.slane %v454, %v491
        %v495 = vunpack.c.l.s4 1983009808
        %v496 = vunpack.c.0.s8 %v495
        %v497 = vperm.slane %v460, %v496
        %v498 = vrot.slane %v497, 4
        %v499 = vsel %vm472, %v498, %v492
        %v500 = vrot.slane %v492, 4
        %v501 = vsel %vm472, %v497, %v500
        %v503 = vunpack.c.l.s4 1934713408
        %v504 = vunpack.c.0.s8 %v503
        %v505 = vperm.slane %v499, %v504
        %v507 = vunpack.c.l.s4 1934713408
        %v508 = vunpack.c.0.s8 %v507
        %v509 = vperm.slane %v501, %v508
        %v510 = vrot.slane %v505, 4
        %v511 = vsel %vm472, 0, %v510
        %v512 = vrot.slane %v509, 4
        %v513 = vsel %vm472, 0, %v512
        %v514 = vsel %vm472, %v486, %v479
        %v516 = vunpack.c.l.s4 1983009808
        %v517 = vunpack.c.0.s8 %v516
        %v518 = vperm.slane %v514, %v517
        %v519 = vrot.slane %v487, 4
        %v520 = vsel %vm472, %v519, %v485
        %v522 = vunpack.c.l.s4 1983009808
        %v523 = vunpack.c.0.s8 %v522
        %v524 = vperm.slane %v520, %v523
        %v525 = vrot.slane %v524, 4
        %v526 = vsel %vm472, %v525, %v518
        %v528 = vunpack.c.l.s4 1934713408
        %v529 = vunpack.c.0.s8 %v528
        %v530 = vperm.slane %v526, %v529
        %v531 = vrot.slane %v530, 4
        %v532 = vsel %vm472, 0, %v531
        %v533 = vsel %vm472, %v512, %v505
        %v535 = vunpack.c.l.s4 1983009808
        %v536 = vunpack.c.0.s8 %v535
        %v537 = vperm.slane %v533, %v536
        %v538 = vrot.slane %v513, 4
        %v539 = vsel %vm472, %v538, %v511
        %v541 = vunpack.c.l.s4 1983009808
        %v542 = vunpack.c.0.s8 %v541
        %v543 = vperm.slane %v539, %v542
        %v544 = vrot.slane %v543, 4
        %v545 = vsel %vm472, %v544, %v537
        %v547 = vunpack.c.l.s4 1934713408
        %v548 = vunpack.c.0.s8 %v547
        %v549 = vperm.slane %v545, %v548
        %v550 = vrot.slane %v549, 4
        %v551 = vsel %vm472, 0, %v550
        %v554 = vpack.i.b16 %v549, %v530
        %v555 = vshrl.u32 %v530, 16
        %v556 = vshrl.u32 %v549, 16
        %v557 = vpack.i.b16 %v556, %v555
        %v560 = vpack.i.b16 %v551, %v532
        %v561 = vshrl.u32 %v532, 16
        %v562 = vshrl.u32 %v551, 16
        %v563 = vpack.i.b16 %v562, %v561
        %564 = vrot.lane.b32.xlu0 %v441, 96
        %v565 = vpop.permute.xlu0 %564
        %566 = vrot.lane.b32.xlu0 %v444, 96
        %v567 = vpop.permute.xlu0 %566
        %568 = vrot.lane.b32.xlu0 %v446, 96
        %v569 = vpop.permute.xlu0 %568
        %570 = vrot.lane.b32.xlu0 %v448, 96
        %v571 = vpop.permute.xlu0 %570
        %v574 = vpack.i.b16 %v567, %v565
        %v575 = vshrl.u32 %v565, 16
        %v576 = vshrl.u32 %v567, 16
        %v577 = vpack.i.b16 %v576, %v575
        %v580 = vpack.i.b16 %v571, %v569
        %v581 = vshrl.u32 %v569, 16
        %v582 = vshrl.u32 %v571, 16
        %v583 = vpack.i.b16 %v582, %v581
        %v586 = vunpack.c.l.s4 1983009808
        %v587 = vunpack.c.0.s8 %v586
        %v588 = vperm.slane %v574, %v587
        %v591 = vunpack.c.l.s4 1983009808
        %v592 = vunpack.c.0.s8 %v591
        %v593 = vperm.slane %v580, %v592
        %v594 = vrot.slane %v593, 4
        %v595 = vsel %vm472, %v594, %v588
        %v596 = vrot.slane %v588, 4
        %v597 = vsel %vm472, %v593, %v596
        %v599 = vunpack.c.l.s4 1934713408
        %v600 = vunpack.c.0.s8 %v599
        %v601 = vperm.slane %v595, %v600
        %v603 = vunpack.c.l.s4 1934713408
        %v604 = vunpack.c.0.s8 %v603
        %v605 = vperm.slane %v597, %v604
        %v606 = vrot.slane %v601, 4
        %v607 = vsel %vm472, 0, %v606
        %v608 = vrot.slane %v605, 4
        %v609 = vsel %vm472, 0, %v608
        %v612 = vunpack.c.l.s4 1983009808
        %v613 = vunpack.c.0.s8 %v612
        %v614 = vperm.slane %v577, %v613
        %v617 = vunpack.c.l.s4 1983009808
        %v618 = vunpack.c.0.s8 %v617
        %v619 = vperm.slane %v583, %v618
        %v620 = vrot.slane %v619, 4
        %v621 = vsel %vm472, %v620, %v614
        %v622 = vrot.slane %v614, 4
        %v623 = vsel %vm472, %v619, %v622
        %v625 = vunpack.c.l.s4 1934713408
        %v626 = vunpack.c.0.s8 %v625
        %v627 = vperm.slane %v621, %v626
        %v629 = vunpack.c.l.s4 1934713408
        %v630 = vunpack.c.0.s8 %v629
        %v631 = vperm.slane %v623, %v630
        %v632 = vrot.slane %v627, 4
        %v633 = vsel %vm472, 0, %v632
        %v634 = vrot.slane %v631, 4
        %v635 = vsel %vm472, 0, %v634
        %v636 = vsel %vm472, %v608, %v601
        %v638 = vunpack.c.l.s4 1983009808
        %v639 = vunpack.c.0.s8 %v638
        %v640 = vperm.slane %v636, %v639
        %v641 = vrot.slane %v609, 4
        %v642 = vsel %vm472, %v641, %v607
        %v644 = vunpack.c.l.s4 1983009808
        %v645 = vunpack.c.0.s8 %v644
        %v646 = vperm.slane %v642, %v645
        %v647 = vrot.slane %v646, 4
        %v648 = vsel %vm472, %v647, %v640
        %v650 = vunpack.c.l.s4 1934713408
        %v651 = vunpack.c.0.s8 %v650
        %v652 = vperm.slane %v648, %v651
        %v653 = vrot.slane %v652, 4
        %v654 = vsel %vm472, 0, %v653
        %v655 = vsel %vm472, %v634, %v627
        %v657 = vunpack.c.l.s4 1983009808
        %v658 = vunpack.c.0.s8 %v657
        %v659 = vperm.slane %v655, %v658
        %v660 = vrot.slane %v635, 4
        %v661 = vsel %vm472, %v660, %v633
        %v663 = vunpack.c.l.s4 1983009808
        %v664 = vunpack.c.0.s8 %v663
        %v665 = vperm.slane %v661, %v664
        %v666 = vrot.slane %v665, 4
        %v667 = vsel %vm472, %v666, %v659
        %v669 = vunpack.c.l.s4 1934713408
        %v670 = vunpack.c.0.s8 %v669
        %v671 = vperm.slane %v667, %v670
        %v672 = vrot.slane %v671, 4
        %v673 = vsel %vm472, 0, %v672
        %v676 = vpack.i.b16 %v671, %v652
        %v677 = vshrl.u32 %v652, 16
        %v678 = vshrl.u32 %v671, 16
        %v679 = vpack.i.b16 %v678, %v677
        %v682 = vpack.i.b16 %v673, %v654
        %v683 = vshrl.u32 %v654, 16
        %v684 = vshrl.u32 %v673, 16
        %v685 = vpack.i.b16 %v684, %v683
        %686 = vrot.lane.b32.xlu0 %v441, 64
        %v687 = vpop.permute.xlu0 %686
        %688 = vrot.lane.b32.xlu0 %v444, 64
        %v689 = vpop.permute.xlu0 %688
        %690 = vrot.lane.b32.xlu0 %v446, 64
        %v691 = vpop.permute.xlu0 %690
        %692 = vrot.lane.b32.xlu0 %v448, 64
        %v693 = vpop.permute.xlu0 %692
        %v696 = vpack.i.b16 %v689, %v687
        %v697 = vshrl.u32 %v687, 16
        %v698 = vshrl.u32 %v689, 16
        %v699 = vpack.i.b16 %v698, %v697
        %v702 = vpack.i.b16 %v693, %v691
        %v703 = vshrl.u32 %v691, 16
        %v704 = vshrl.u32 %v693, 16
        %v705 = vpack.i.b16 %v704, %v703
        %v708 = vunpack.c.l.s4 1983009808
        %v709 = vunpack.c.0.s8 %v708
        %v710 = vperm.slane %v696, %v709
        %v713 = vunpack.c.l.s4 1983009808
        %v714 = vunpack.c.0.s8 %v713
        %v715 = vperm.slane %v702, %v714
        %v716 = vrot.slane %v715, 4
        %v717 = vsel %vm472, %v716, %v710
        %v718 = vrot.slane %v710, 4
        %v719 = vsel %vm472, %v715, %v718
        %v721 = vunpack.c.l.s4 1934713408
        %v722 = vunpack.c.0.s8 %v721
        %v723 = vperm.slane %v717, %v722
        %v725 = vunpack.c.l.s4 1934713408
        %v726 = vunpack.c.0.s8 %v725
        %v727 = vperm.slane %v719, %v726
        %v728 = vrot.slane %v723, 4
        %v729 = vsel %vm472, 0, %v728
        %v730 = vrot.slane %v727, 4
        %v731 = vsel %vm472, 0, %v730
        %v734 = vunpack.c.l.s4 1983009808
        %v735 = vunpack.c.0.s8 %v734
        %v736 = vperm.slane %v699, %v735
        %v739 = vunpack.c.l.s4 1983009808
        %v740 = vunpack.c.0.s8 %v739
        %v741 = vperm.slane %v705, %v740
        %v742 = vrot.slane %v741, 4
        %v743 = vsel %vm472, %v742, %v736
        %v744 = vrot.slane %v736, 4
        %v745 = vsel %vm472, %v741, %v744
        %v747 = vunpack.c.l.s4 1934713408
        %v748 = vunpack.c.0.s8 %v747
        %v749 = vperm.slane %v743, %v748
        %v751 = vunpack.c.l.s4 1934713408
        %v752 = vunpack.c.0.s8 %v751
        %v753 = vperm.slane %v745, %v752
        %v754 = vrot.slane %v749, 4
        %v755 = vsel %vm472, 0, %v754
        %v756 = vrot.slane %v753, 4
        %v757 = vsel %vm472, 0, %v756
        %v758 = vsel %vm472, %v730, %v723
        %v760 = vunpack.c.l.s4 1983009808
        %v761 = vunpack.c.0.s8 %v760
        %v762 = vperm.slane %v758, %v761
        %v763 = vrot.slane %v731, 4
        %v764 = vsel %vm472, %v763, %v729
        %v766 = vunpack.c.l.s4 1983009808
        %v767 = vunpack.c.0.s8 %v766
        %v768 = vperm.slane %v764, %v767
        %v769 = vrot.slane %v768, 4
        %v770 = vsel %vm472, %v769, %v762
        %v772 = vunpack.c.l.s4 1934713408
        %v773 = vunpack.c.0.s8 %v772
        %v774 = vperm.slane %v770, %v773
        %v775 = vrot.slane %v774, 4
        %v776 = vsel %vm472, 0, %v775
        %v777 = vsel %vm472, %v756, %v749
        %v779 = vunpack.c.l.s4 1983009808
        %v780 = vunpack.c.0.s8 %v779
        %v781 = vperm.slane %v777, %v780
        %v782 = vrot.slane %v757, 4
        %v783 = vsel %vm472, %v782, %v755
        %v785 = vunpack.c.l.s4 1983009808
        %v786 = vunpack.c.0.s8 %v785
        %v787 = vperm.slane %v783, %v786
        %v788 = vrot.slane %v787, 4
        %v789 = vsel %vm472, %v788, %v781
        %v791 = vunpack.c.l.s4 1934713408
        %v792 = vunpack.c.0.s8 %v791
        %v793 = vperm.slane %v789, %v792
        %v794 = vrot.slane %v793, 4
        %v795 = vsel %vm472, 0, %v794
        %v798 = vpack.i.b16 %v793, %v774
        %v799 = vshrl.u32 %v774, 16
        %v800 = vshrl.u32 %v793, 16
        %v801 = vpack.i.b16 %v800, %v799
        %v804 = vpack.i.b16 %v795, %v776
        %v805 = vshrl.u32 %v776, 16
        %v806 = vshrl.u32 %v795, 16
        %v807 = vpack.i.b16 %v806, %v805
        %v809 = vperm.slane %v405, 0
        %vm811 = vcmask 64512
        %v813 = vsel %vm811, %v554, 0
        %v816 = vsel %vm811, %v676, 0
        %818 = vmatpush.bf16.xpose.msra.mxu0 0
        %819 = vmatpush.bf16.xpose.msra.mxu0 0
        %820 = vmatpush.bf16.xpose.msra.mxu0 0
        %821 = vmatpush.bf16.xpose.msra.mxu0 0
        %822 = vmatpush.bf16.xpose.msra.mxu0 0
        %823 = vmatpush.bf16.xpose.msra.mxu0 0
        %824 = vmatpush.bf16.xpose.msra.mxu0 0
        %825 = vmatpush.bf16.xpose.msra.mxu0 %v816
        %826 = vmatmul.bf16.gmra.mxu0 %v813
        %v827 = vpop.f32.mrf.mxu0
        %v828 = vadd.f32 %v809, %v827
        %v829 = vpop.f32.mrf.mxu0
        %830 = vdwg.mxu0
        %v832 = vsel %vm811, %v557, 0
        %v835 = vsel %vm811, %v679, 0
        %837 = vmatpush.bf16.xpose.msra.mxu0 0
        %838 = vmatpush.bf16.xpose.msra.mxu0 0
        %839 = vmatpush.bf16.xpose.msra.mxu0 0
        %840 = vmatpush.bf16.xpose.msra.mxu0 0
        %841 = vmatpush.bf16.xpose.msra.mxu0 0
        %842 = vmatpush.bf16.xpose.msra.mxu0 0
        %843 = vmatpush.bf16.xpose.msra.mxu0 0
        %844 = vmatpush.bf16.xpose.msra.mxu0 %v835
        %845 = vmatmul.bf16.gmra.mxu0 %v832
        %v846 = vpop.f32.mrf.mxu0
        %v847 = vadd.f32 %v809, %v846
        %v848 = vpop.f32.mrf.mxu0
        %849 = vdwg.mxu0
        %v851 = vsel %vm811, %v560, 0
        %v854 = vsel %vm811, %v682, 0
        %856 = vmatpush.bf16.xpose.msra.mxu0 0
        %857 = vmatpush.bf16.xpose.msra.mxu0 0
        %858 = vmatpush.bf16.xpose.msra.mxu0 0
        %859 = vmatpush.bf16.xpose.msra.mxu0 0
        %860 = vmatpush.bf16.xpose.msra.mxu0 0
        %861 = vmatpush.bf16.xpose.msra.mxu0 0
        %862 = vmatpush.bf16.xpose.msra.mxu0 0
        %863 = vmatpush.bf16.xpose.msra.mxu0 %v854
        %864 = vmatmul.bf16.gmra.mxu0 %v851
        %v865 = vpop.f32.mrf.mxu0
        %v866 = vadd.f32 %v809, %v865
        %v867 = vpop.f32.mrf.mxu0
        %868 = vdwg.mxu0
        %v870 = vsel %vm811, %v563, 0
        %v873 = vsel %vm811, %v685, 0
        %875 = vmatpush.bf16.xpose.msra.mxu0 0
        %876 = vmatpush.bf16.xpose.msra.mxu0 0
        %877 = vmatpush.bf16.xpose.msra.mxu0 0
        %878 = vmatpush.bf16.xpose.msra.mxu0 0
        %879 = vmatpush.bf16.xpose.msra.mxu0 0
        %880 = vmatpush.bf16.xpose.msra.mxu0 0
        %881 = vmatpush.bf16.xpose.msra.mxu0 0
        %882 = vmatpush.bf16.xpose.msra.mxu0 %v873
        %883 = vmatmul.bf16.gmra.mxu0 %v870
        %v884 = vpop.f32.mrf.mxu0
        %v885 = vadd.f32 %v809, %v884
        %v886 = vpop.f32.mrf.mxu0
        %887 = vdwg.mxu0
        %v888 = vsel %vm811, %v828, -inf
        %889 = vmax.xlane.f32.xlu0 %v888
        %v890 = vpop.xlane.xlu0 %889
        %v891 = vsel %vm811, %v847, -inf
        %892 = vmax.xlane.f32.xlu0 %v891
        %v893 = vpop.xlane.xlu0 %892
        %v894 = vsel %vm811, %v866, -inf
        %895 = vmax.xlane.f32.xlu0 %v894
        %v896 = vpop.xlane.xlu0 %895
        %v897 = vsel %vm811, %v885, -inf
        %898 = vmax.xlane.f32.xlu0 %v897
        %v899 = vpop.xlane.xlu0 %898
        %v900 = vsub.f32 %v828, %v890
        %v901 = vsub.f32 %v847, %v893
        %v902 = vsub.f32 %v866, %v896
        %v903 = vsub.f32 %v885, %v899
        %v904 = vmul.f32 %v900, 1.442695
        %v905 = vpow.pop %v904
        %v906 = vmul.f32 %v901, 1.442695
        %v907 = vpow.pop %v906
        %v908 = vmul.f32 %v902, 1.442695
        %v909 = vpow.pop %v908
        %v910 = vmul.f32 %v903, 1.442695
        %v911 = vpow.pop %v910
        %v912 = vsel %vm811, %v905, 0.0
        %913 = vadd.xlane.f32.xlu0 %v912
        %v914 = vpop.xlane.xlu0 %913
        %v915 = vsel %vm811, %v907, 0.0
        %916 = vadd.xlane.f32.xlu0 %v915
        %v917 = vpop.xlane.xlu0 %916
        %v918 = vsel %vm811, %v909, 0.0
        %919 = vadd.xlane.f32.xlu0 %v918
        %v920 = vpop.xlane.xlu0 %919
        %v921 = vsel %vm811, %v911, 0.0
        %922 = vadd.xlane.f32.xlu0 %v921
        %v923 = vpop.xlane.xlu0 %922
        %v924 = vrcp.pop %v914
        %v925 = vrcp.pop %v917
        %v926 = vrcp.pop %v920
        %v927 = vrcp.pop %v923
        %v928 = vmul.f32 %v905, %v924
        %v929 = vmul.f32 %v907, %v925
        %v930 = vmul.f32 %v909, %v926
        %v931 = vmul.f32 %v911, %v927
        %v932 = vpack.c.bf16 %v928, %v928
        %v933 = vpack.c.bf16 %v929, %v929
        %v934 = vpack.c.bf16 %v930, %v930
        %v935 = vpack.c.bf16 %v931, %v931
        %v937 = vsel %vm811, %v932, 0
        %vm939 = vcmask 1043456
        %v941 = vsel %vm939, %v798, 0
        %943 = vmatpush.bf16.msra.mxu0 0
        %944 = vmatpush.bf16.msra.mxu0 0
        %945 = vmatpush.bf16.msra.mxu0 0
        %946 = vmatpush.bf16.msra.mxu0 0
        %947 = vmatpush.bf16.msra.mxu0 0
        %948 = vmatpush.bf16.msra.mxu0 0
        %949 = vmatpush.bf16.msra.mxu0 0
        %950 = vmatpush.bf16.msra.mxu0 %v941
        %951 = vmatmul.bf16.gmra.mxu0 %v937
        %v952 = vpop.f32.mrf.mxu0
        %v953 = vadd.f32 0.0, %v952
        %v954 = vpop.f32.mrf.mxu0
        %955 = vdwg.mxu0
        %v957 = vsel %vm811, %v933, 0
        %v960 = vsel %vm939, %v801, 0
        %962 = vmatpush.bf16.msra.mxu0 0
        %963 = vmatpush.bf16.msra.mxu0 0
        %964 = vmatpush.bf16.msra.mxu0 0
        %965 = vmatpush.bf16.msra.mxu0 0
        %966 = vmatpush.bf16.msra.mxu0 0
        %967 = vmatpush.bf16.msra.mxu0 0
        %968 = vmatpush.bf16.msra.mxu0 0
        %969 = vmatpush.bf16.msra.mxu0 %v960
        %970 = vmatmul.bf16.gmra.mxu0 %v957
        %v971 = vpop.f32.mrf.mxu0
        %v972 = vadd.f32 0.0, %v971
        %v973 = vpop.f32.mrf.mxu0
        %974 = vdwg.mxu0
        %v976 = vsel %vm811, %v934, 0
        %v979 = vsel %vm939, %v804, 0
        %981 = vmatpush.bf16.msra.mxu0 0
        %982 = vmatpush.bf16.msra.mxu0 0
        %983 = vmatpush.bf16.msra.mxu0 0
        %984 = vmatpush.bf16.msra.mxu0 0
        %985 = vmatpush.bf16.msra.mxu0 0
        %986 = vmatpush.bf16.msra.mxu0 0
        %987 = vmatpush.bf16.msra.mxu0 0
        %988 = vmatpush.bf16.msra.mxu0 %v979
        %989 = vmatmul.bf16.gmra.mxu0 %v976
        %v990 = vpop.f32.mrf.mxu0
        %v991 = vadd.f32 0.0, %v990
        %v992 = vpop.f32.mrf.mxu0
        %993 = vdwg.mxu0
        %v995 = vsel %vm811, %v935, 0
        %v998 = vsel %vm939, %v807, 0
        %1000 = vmatpush.bf16.msra.mxu0 0
        %1001 = vmatpush.bf16.msra.mxu0 0
        %1002 = vmatpush.bf16.msra.mxu0 0
        %1003 = vmatpush.bf16.msra.mxu0 0
        %1004 = vmatpush.bf16.msra.mxu0 0
        %1005 = vmatpush.bf16.msra.mxu0 0
        %1006 = vmatpush.bf16.msra.mxu0 0
        %1007 = vmatpush.bf16.msra.mxu0 %v998
        %1008 = vmatmul.bf16.gmra.mxu0 %v995
        %v1009 = vpop.f32.mrf.mxu0
        %v1010 = vadd.f32 0.0, %v1009
        %v1011 = vpop.f32.mrf.mxu0
        %1012 = vdwg.mxu0
        %v1013 = vrot.slane %v991, 4
        %vm1014 = vcmask 1047556
        %v1015 = vsel %vm1014, %v1013, %v953
        %v1016 = vrot.slane %v953, 4
        %v1017 = vsel %vm1014, %v991, %v1016
        %v1019 = vunpack.c.l.s4 1983009808
        %v1020 = vunpack.c.0.s8 %v1019
        %v1021 = vperm.slane %v1015, %v1020
        %v1023 = vunpack.c.l.s4 1983009808
        %v1024 = vunpack.c.0.s8 %v1023
        %v1025 = vperm.slane %v1017, %v1024
        %v1026 = vrot.slane %v1010, 4
        %v1027 = vsel %vm1014, %v1026, %v972
        %v1028 = vrot.slane %v972, 4
        %v1029 = vsel %vm1014, %v1010, %v1028
        %v1031 = vunpack.c.l.s4 1983009808
        %v1032 = vunpack.c.0.s8 %v1031
        %v1033 = vperm.slane %v1027, %v1032
        %v1035 = vunpack.c.l.s4 1983009808
        %v1036 = vunpack.c.0.s8 %v1035
        %v1037 = vperm.slane %v1029, %v1036
        %v1038 = vrot.slane %v1033, 4
        %v1039 = vsel %vm1014, %v1038, %v1021
        %v1040 = vrot.slane %v1021, 4
        %v1041 = vsel %vm1014, %v1033, %v1040
        %v1043 = vunpack.c.l.s4 1934713408
        %v1044 = vunpack.c.0.s8 %v1043
        %v1045 = vperm.slane %v1039, %v1044
        %v1047 = vunpack.c.l.s4 1934713408
        %v1048 = vunpack.c.0.s8 %v1047
        %v1049 = vperm.slane %v1041, %v1048
        %v1050 = vrot.slane %v1037, 4
        %v1051 = vsel %vm1014, %v1050, %v1025
        %v1052 = vrot.slane %v1025, 4
        %v1053 = vsel %vm1014, %v1037, %v1052
        %v1055 = vunpack.c.l.s4 1934713408
        %v1056 = vunpack.c.0.s8 %v1055
        %v1057 = vperm.slane %v1051, %v1056
        %v1059 = vunpack.c.l.s4 1934713408
        %v1060 = vunpack.c.0.s8 %v1059
        %v1061 = vperm.slane %v1053, %v1060
        %v1062 = vrot.slane %v1045, 4
        %v1063 = vsel %vm1014, 0.0, %v1062
        %v1064 = vrot.slane %v1049, 4
        %v1065 = vsel %vm1014, 0.0, %v1064
        %v1066 = vrot.slane %v1057, 4
        %v1067 = vsel %vm1014, 0.0, %v1066
        %v1068 = vrot.slane %v1061, 4
        %v1069 = vsel %vm1014, 0.0, %v1068
        %v1070 = vsel %vm1014, %v1064, %v1045
        %v1072 = vunpack.c.l.s4 1983009808
        %v1073 = vunpack.c.0.s8 %v1072
        %v1074 = vperm.slane %v1070, %v1073
        %v1075 = vrot.slane %v1065, 4
        %v1076 = vsel %vm1014, %v1075, %v1063
        %v1078 = vunpack.c.l.s4 1983009808
        %v1079 = vunpack.c.0.s8 %v1078
        %v1080 = vperm.slane %v1076, %v1079
        %v1081 = vsel %vm1014, %v1068, %v1057
        %v1083 = vunpack.c.l.s4 1983009808
        %v1084 = vunpack.c.0.s8 %v1083
        %v1085 = vperm.slane %v1081, %v1084
        %v1086 = vrot.slane %v1069, 4
        %v1087 = vsel %vm1014, %v1086, %v1067
        %v1089 = vunpack.c.l.s4 1983009808
        %v1090 = vunpack.c.0.s8 %v1089
        %v1091 = vperm.slane %v1087, %v1090
        %v1092 = vrot.slane %v1080, 4
        %v1093 = vsel %vm1014, %v1092, %v1074
        %v1094 = vrot.slane %v1074, 4
        %v1095 = vsel %vm1014, %v1080, %v1094
        %v1097 = vunpack.c.l.s4 1934713408
        %v1098 = vunpack.c.0.s8 %v1097
        %v1099 = vperm.slane %v1093, %v1098
        %v1101 = vunpack.c.l.s4 1934713408
        %v1102 = vunpack.c.0.s8 %v1101
        %v1103 = vperm.slane %v1095, %v1102
        %v1104 = vrot.slane %v1091, 4
        %v1105 = vsel %vm1014, %v1104, %v1085
        %v1106 = vrot.slane %v1085, 4
        %v1107 = vsel %vm1014, %v1091, %v1106
        %v1109 = vunpack.c.l.s4 1934713408
        %v1110 = vunpack.c.0.s8 %v1109
        %v1111 = vperm.slane %v1105, %v1110
        %v1113 = vunpack.c.l.s4 1934713408
        %v1114 = vunpack.c.0.s8 %v1113
        %v1115 = vperm.slane %v1107, %v1114
        %v1116 = vrot.slane %v1111, 4
        %v1117 = vsel %vm1014, %v1116, %v1099
        %v1118 = vrot.slane %v1099, 4
        %v1119 = vsel %vm1014, %v1111, %v1118
        %v1120 = vrot.slane %v1115, 4
        %v1121 = vsel %vm1014, %v1120, %v1103
        %v1122 = vrot.slane %v1103, 4
        %v1123 = vsel %vm1014, %v1115, %v1122
        %1125 = vrot.lane.b32.xlu0 %v1119, 8
        %v1126 = vpop.permute.xlu0 %1125
        %1129 = vrot.lane.b32.xlu0 %v1121, 16
        %v1130 = vpop.permute.xlu0 %1129
        %1133 = vrot.lane.b32.xlu0 %v1123, 24
        %v1134 = vpop.permute.xlu0 %1133
        %v1136 = vsel %vm811, %v1117, %v1126
        %vm1137 = vcmask 130048
        %v1138 = vsel %vm1137, %v1136, %v1130
        %vm1139 = vcmask 195584
        %v1140 = vsel %vm1139, %v1138, %v1134
        %v1141 = vpack.c.bf16 %v1140, %v1140
        %v1142 = vld [vmem:[%s3] sm:$0xf]
        %v1143 = vld [vmem:[%s3 + $0x4] sm:$0xf]
        %v1144 = vld [vmem:[%s3 + $0x8] sm:$0xf]
        %v1145 = vld [vmem:[%s3 + $0xc] sm:$0xf]
        %v1146 = vperm.slane %v406, 1
        %v1151 = vunpack.c.l.b16 %v1142
        %v1152 = vunpack.c.l.b16 %v1143
        %v1153 = vunpack.c.l.b16 %v1144
        %v1154 = vunpack.c.l.b16 %v1145
        %v1155 = vpack.c.b16 %v1152, %v1151
        %v1156 = vpack.c.b16 %v1154, %v1153
        %v1160 = vsel %vm371, %v1141, 0
        %1162 = vmatpush.bf16.msra.mxu0 0
        %1163 = vmatpush.bf16.msra.mxu0 0
        %1164 = vmatpush.bf16.msra.mxu0 0
        %1165 = vmatpush.bf16.msra.mxu0 0
        %1166 = vmatpush.bf16.msra.mxu0 0
        %1167 = vmatpush.bf16.msra.mxu0 0
        %1168 = vmatpush.bf16.msra.mxu0 %v1156
        %1169 = vmatpush.bf16.msra.mxu0 %v1155
        %1170 = vmatmul.bf16.gmra.mxu0 %v1160
        %v1171 = vpop.f32.mrf.mxu0
        %v1172 = vadd.f32 %v1146, %v1171
        %v1173 = vpop.f32.mrf.mxu0
        %1174 = vdwg.mxu0
        %v1175 = vadd.f32 %v404, %v1172
        %v1176 = vsel %vm371, %v1175, 0.0
        %1177 = vadd.xlane.f32.xlu0 %v1176
        %v1178 = vpop.xlane.xlu0 %1177
        %v1179 = vmul.f32 %v1178, %v381
        %v1180 = vsub.f32 %v1175, %v1179
        %v1181 = vmul.f32 %v1180, %v1180
        %v1182 = vsel %vm371, %v1181, 0.0
        %1183 = vadd.xlane.f32.xlu0 %v1182
        %v1184 = vpop.xlane.xlu0 %1183
        %v1185 = vmul.f32 %v1184, %v381
        %v1186 = vadd.f32 %v1185, 1e-12
        %v1187 = vrsqrt.pop %v1186
        %v1188 = vmul.f32 %v1187, %v1186
        %v1189 = vmul.f32 %v1188, %v1187
        %v1190 = vmul.f32 0.5, %v1189
        %v1191 = vsub.f32 1.5, %v1190
        %v1192 = vmul.f32 %v1187, %v1191
        %vm1193 = vweird.f32 %v1186
        %vm1194 = vweird.f32 %v1187
        %vm1195 = vmor %vm1193, %vm1194
        %v1196 = vsel %vm1195, %v1187, %v1192
        %v1197 = vmul.f32 %v1180, %v1196
        %v1198 = vperm.slane %v406, 2
        %v1199 = vmul.f32 %v1197, %v1198
        %v1200 = vperm.slane %v406, 3
        %v1201 = vadd.f32 %v1199, %v1200
        %v1202 = vpack.c.bf16 %v1201, %v1201
        %v1203 = vld [vmem:[%s4] sm:$0xf]
        %v1204 = vld [vmem:[%s4 + $0x4] sm:$0xf]
        %v1205 = vld [vmem:[%s4 + $0x8] sm:$0xf]
        %v1206 = vld [vmem:[%s4 + $0xc] sm:$0xf]
        %v1207 = vperm.slane %v406, 4
        %v1212 = vunpack.c.l.b16 %v1203
        %v1213 = vunpack.c.l.b16 %v1204
        %v1214 = vunpack.c.l.b16 %v1205
        %v1215 = vunpack.c.l.b16 %v1206
        %v1216 = vpack.c.b16 %v1213, %v1212
        %v1217 = vpack.c.b16 %v1215, %v1214
        %v1221 = vsel %vm371, %v1202, 0
        %1223 = vmatpush.bf16.msra.mxu0 0
        %1224 = vmatpush.bf16.msra.mxu0 0
        %1225 = vmatpush.bf16.msra.mxu0 0
        %1226 = vmatpush.bf16.msra.mxu0 0
        %1227 = vmatpush.bf16.msra.mxu0 0
        %1228 = vmatpush.bf16.msra.mxu0 0
        %1229 = vmatpush.bf16.msra.mxu0 %v1217
        %1230 = vmatpush.bf16.msra.mxu0 %v1216
        %1231 = vmatmul.bf16.gmra.mxu0 %v1221
        %v1232 = vpop.f32.mrf.mxu0
        %v1233 = vadd.f32 %v1207, %v1232
        %v1234 = vpop.f32.mrf.mxu0
        %1235 = vdwg.mxu0
        %v1236 = vmul.f32 %v1233, 0.5
        %v1237 = vmul.f32 %v1233, 0.044715
        %v1238 = vmul.f32 %v1237, %v1233
        %v1239 = vmul.f32 %v1238, %v1233
        %v1240 = vadd.f32 %v1233, %v1239
        %v1241 = vmul.f32 %v1240, 0.7978846
        %v1242 = vtanh.pop %v1241
        %v1243 = vadd.f32 %v1242, 1.0
        %v1244 = vmul.f32 %v1236, %v1243
        %v1245 = vpack.c.bf16 %v1244, %v1244
        %v1246 = vld [vmem:[%s5] sm:$0xf]
        %v1247 = vld [vmem:[%s5 + $0x4] sm:$0xf]
        %v1248 = vld [vmem:[%s5 + $0x8] sm:$0xf]
        %v1249 = vld [vmem:[%s5 + $0xc] sm:$0xf]
        %v1250 = vld [vmem:[%s5 + $0x10] sm:$0xf]
        %v1251 = vld [vmem:[%s5 + $0x14] sm:$0xf]
        %v1252 = vld [vmem:[%s5 + $0x18] sm:$0xf]
        %v1253 = vld [vmem:[%s5 + $0x1c] sm:$0xf]
        %v1254 = vld [vmem:[%s5 + $0x20] sm:$0xf]
        %v1255 = vld [vmem:[%s5 + $0x24] sm:$0xf]
        %v1256 = vld [vmem:[%s5 + $0x28] sm:$0xf]
        %v1257 = vld [vmem:[%s5 + $0x2c] sm:$0xf]
        %v1258 = vld [vmem:[%s5 + $0x30] sm:$0xf]
        %v1259 = vld [vmem:[%s5 + $0x34] sm:$0xf]
        %v1260 = vld [vmem:[%s5 + $0x38] sm:$0xf]
        %v1261 = vld [vmem:[%s5 + $0x3c] sm:$0xf]
        %v1262 = vperm.slane %v406, 5
        %v1279 = vunpack.c.l.b16 %v1246
        %v1280 = vunpack.c.l.b16 %v1247
        %v1281 = vunpack.c.l.b16 %v1248
        %v1282 = vunpack.c.l.b16 %v1249
        %v1283 = vunpack.c.l.b16 %v1250
        %v1284 = vunpack.c.l.b16 %v1251
        %v1285 = vunpack.c.l.b16 %v1252
        %v1286 = vunpack.c.l.b16 %v1253
        %v1287 = vunpack.c.l.b16 %v1254
        %v1288 = vunpack.c.l.b16 %v1255
        %v1289 = vunpack.c.l.b16 %v1256
        %v1290 = vunpack.c.l.b16 %v1257
        %v1291 = vunpack.c.l.b16 %v1258
        %v1292 = vunpack.c.l.b16 %v1259
        %v1293 = vunpack.c.l.b16 %v1260
        %v1294 = vunpack.c.l.b16 %v1261
        %v1295 = vpack.c.b16 %v1280, %v1279
        %v1296 = vpack.c.b16 %v1282, %v1281
        %v1297 = vpack.c.b16 %v1284, %v1283
        %v1298 = vpack.c.b16 %v1286, %v1285
        %v1299 = vpack.c.b16 %v1288, %v1287
        %v1300 = vpack.c.b16 %v1290, %v1289
        %v1301 = vpack.c.b16 %v1292, %v1291
        %v1302 = vpack.c.b16 %v1294, %v1293
        %1311 = vmatpush.bf16.msra.mxu0 %v1302
        %1312 = vmatpush.bf16.msra.mxu0 %v1301
        %1313 = vmatpush.bf16.msra.mxu0 %v1300
        %1314 = vmatpush.bf16.msra.mxu0 %v1299
        %1315 = vmatpush.bf16.msra.mxu0 %v1298
        %1316 = vmatpush.bf16.msra.mxu0 %v1297
        %1317 = vmatpush.bf16.msra.mxu0 %v1296
        %1318 = vmatpush.bf16.msra.mxu0 %v1295
        %1319 = vmatmul.bf16.gmra.mxu0 %v1245
        %v1320 = vpop.f32.mrf.mxu0
        %v1321 = vadd.f32 %v1262, %v1320
        %v1322 = vpop.f32.mrf.mxu0
        %1323 = vdwg.mxu0
        %v1324 = vadd.f32 %v1201, %v1321
        %v1325 = vsel %vm371, %v1324, 0.0
        %1326 = vadd.xlane.f32.xlu0 %v1325
        %v1327 = vpop.xlane.xlu0 %1326
        %v1328 = vmul.f32 %v1327, %v381
        %v1329 = vsub.f32 %v1324, %v1328
        %v1330 = vmul.f32 %v1329, %v1329
        %v1331 = vsel %vm371, %v1330, 0.0
        %1332 = vadd.xlane.f32.xlu0 %v1331
        %v1333 = vpop.xlane.xlu0 %1332
        %v1334 = vmul.f32 %v1333, %v381
        %v1335 = vadd.f32 %v1334, 1e-12
        %v1336 = vrsqrt.pop %v1335
        %v1337 = vmul.f32 %v1336, %v1335
        %v1338 = vmul.f32 %v1337, %v1336
        %v1339 = vmul.f32 0.5, %v1338
        %v1340 = vsub.f32 1.5, %v1339
        %v1341 = vmul.f32 %v1336, %v1340
        %vm1342 = vweird.f32 %v1335
        %vm1343 = vweird.f32 %v1336
        %vm1344 = vmor %vm1342, %vm1343
        %v1345 = vsel %vm1344, %v1336, %v1341
        %v1346 = vmul.f32 %v1329, %v1345
        %v1347 = vperm.slane %v406, 6
        %v1348 = vmul.f32 %v1346, %v1347
        %v1349 = vperm.slane %v406, 7
        %v1350 = vadd.f32 %v1348, %v1349
        %s1351 = scalar_lea.vmem %s6, 8
        %v1352 = vld [vmem:[%s1351] sm:$0xff]
        %v1353 = vpack.c.bf16 %v1350, %v1350
        %s1354 = scalar_lea.vmem %s2, 16
        %v1355 = vld [vmem:[%s1354] sm:$0xf]
        %v1356 = vld [vmem:[%s1354 + $0x4] sm:$0xf]
        %v1357 = vld [vmem:[%s1354 + $0x8] sm:$0xf]
        %v1358 = vld [vmem:[%s1354 + $0xc] sm:$0xf]
        %v1359 = vperm.slane %v1352, 0
        %v1364 = vunpack.c.l.b16 %v1355
        %v1365 = vunpack.c.l.b16 %v1356
        %v1366 = vunpack.c.l.b16 %v1357
        %v1367 = vunpack.c.l.b16 %v1358
        %v1368 = vpack.c.b16 %v1365, %v1364
        %v1369 = vpack.c.b16 %v1367, %v1366
        %v1373 = vsel %vm371, %v1353, 0
        %1375 = vmatpush.bf16.msra.mxu0 0
        %1376 = vmatpush.bf16.msra.mxu0 0
        %1377 = vmatpush.bf16.msra.mxu0 0
        %1378 = vmatpush.bf16.msra.mxu0 0
        %1379 = vmatpush.bf16.msra.mxu0 0
        %1380 = vmatpush.bf16.msra.mxu0 0
        %1381 = vmatpush.bf16.msra.mxu0 %v1369
        %1382 = vmatpush.bf16.msra.mxu0 %v1368
        %1383 = vmatmul.bf16.gmra.mxu0 %v1373
        %v1384 = vpop.f32.mrf.mxu0
        %v1385 = vadd.f32 %v1359, %v1384
        %v1386 = vpop.f32.mrf.mxu0
        %1387 = vdwg.mxu0
        %v1388 = vpack.c.bf16 %v1385, %v1385
        %1390 = vrot.lane.b32.xlu0 %v1388, 120
        %v1391 = vpop.permute.xlu0 %1390
        %1392 = vrot.lane.b32.xlu0 %v1388, 112
        %v1393 = vpop.permute.xlu0 %1392
        %1394 = vrot.lane.b32.xlu0 %v1388, 104
        %v1395 = vpop.permute.xlu0 %1394
        %v1398 = vpack.i.b16 %v1391, %v1388
        %v1399 = vshrl.u32 %v1388, 16
        %v1400 = vshrl.u32 %v1391, 16
        %v1401 = vpack.i.b16 %v1400, %v1399
        %v1404 = vpack.i.b16 %v1395, %v1393
        %v1405 = vshrl.u32 %v1393, 16
        %v1406 = vshrl.u32 %v1395, 16
        %v1407 = vpack.i.b16 %v1406, %v1405
        %v1410 = vunpack.c.l.s4 1983009808
        %v1411 = vunpack.c.0.s8 %v1410
        %v1412 = vperm.slane %v1398, %v1411
        %v1415 = vunpack.c.l.s4 1983009808
        %v1416 = vunpack.c.0.s8 %v1415
        %v1417 = vperm.slane %v1404, %v1416
        %v1418 = vrot.slane %v1417, 4
        %v1419 = vsel %vm472, %v1418, %v1412
        %v1420 = vrot.slane %v1412, 4
        %v1421 = vsel %vm472, %v1417, %v1420
        %v1423 = vunpack.c.l.s4 1934713408
        %v1424 = vunpack.c.0.s8 %v1423
        %v1425 = vperm.slane %v1419, %v1424
        %v1427 = vunpack.c.l.s4 1934713408
        %v1428 = vunpack.c.0.s8 %v1427
        %v1429 = vperm.slane %v1421, %v1428
        %v1430 = vrot.slane %v1425, 4
        %v1431 = vsel %vm472, 0, %v1430
        %v1432 = vrot.slane %v1429, 4
        %v1433 = vsel %vm472, 0, %v1432
        %v1436 = vunpack.c.l.s4 1983009808
        %v1437 = vunpack.c.0.s8 %v1436
        %v1438 = vperm.slane %v1401, %v1437
        %v1441 = vunpack.c.l.s4 1983009808
        %v1442 = vunpack.c.0.s8 %v1441
        %v1443 = vperm.slane %v1407, %v1442
        %v1444 = vrot.slane %v1443, 4
        %v1445 = vsel %vm472, %v1444, %v1438
        %v1446 = vrot.slane %v1438, 4
        %v1447 = vsel %vm472, %v1443, %v1446
        %v1449 = vunpack.c.l.s4 1934713408
        %v1450 = vunpack.c.0.s8 %v1449
        %v1451 = vperm.slane %v1445, %v1450
        %v1453 = vunpack.c.l.s4 1934713408
        %v1454 = vunpack.c.0.s8 %v1453
        %v1455 = vperm.slane %v1447, %v1454
        %v1456 = vrot.slane %v1451, 4
        %v1457 = vsel %vm472, 0, %v1456
        %v1458 = vrot.slane %v1455, 4
        %v1459 = vsel %vm472, 0, %v1458
        %v1460 = vsel %vm472, %v1432, %v1425
        %v1462 = vunpack.c.l.s4 1983009808
        %v1463 = vunpack.c.0.s8 %v1462
        %v1464 = vperm.slane %v1460, %v1463
        %v1465 = vrot.slane %v1433, 4
        %v1466 = vsel %vm472, %v1465, %v1431
        %v1468 = vunpack.c.l.s4 1983009808
        %v1469 = vunpack.c.0.s8 %v1468
        %v1470 = vperm.slane %v1466, %v1469
        %v1471 = vrot.slane %v1470, 4
        %v1472 = vsel %vm472, %v1471, %v1464
        %v1474 = vunpack.c.l.s4 1934713408
        %v1475 = vunpack.c.0.s8 %v1474
        %v1476 = vperm.slane %v1472, %v1475
        %v1477 = vrot.slane %v1476, 4
        %v1478 = vsel %vm472, 0, %v1477
        %v1479 = vsel %vm472, %v1458, %v1451
        %v1481 = vunpack.c.l.s4 1983009808
        %v1482 = vunpack.c.0.s8 %v1481
        %v1483 = vperm.slane %v1479, %v1482
        %v1484 = vrot.slane %v1459, 4
        %v1485 = vsel %vm472, %v1484, %v1457
        %v1487 = vunpack.c.l.s4 1983009808
        %v1488 = vunpack.c.0.s8 %v1487
        %v1489 = vperm.slane %v1485, %v1488
        %v1490 = vrot.slane %v1489, 4
        %v1491 = vsel %vm472, %v1490, %v1483
        %v1493 = vunpack.c.l.s4 1934713408
        %v1494 = vunpack.c.0.s8 %v1493
        %v1495 = vperm.slane %v1491, %v1494
        %v1496 = vrot.slane %v1495, 4
        %v1497 = vsel %vm472, 0, %v1496
        %v1500 = vpack.i.b16 %v1495, %v1476
        %v1501 = vshrl.u32 %v1476, 16
        %v1502 = vshrl.u32 %v1495, 16
        %v1503 = vpack.i.b16 %v1502, %v1501
        %v1506 = vpack.i.b16 %v1497, %v1478
        %v1507 = vshrl.u32 %v1478, 16
        %v1508 = vshrl.u32 %v1497, 16
        %v1509 = vpack.i.b16 %v1508, %v1507
        %1510 = vrot.lane.b32.xlu0 %v1388, 96
        %v1511 = vpop.permute.xlu0 %1510
        %1512 = vrot.lane.b32.xlu0 %v1391, 96
        %v1513 = vpop.permute.xlu0 %1512
        %1514 = vrot.lane.b32.xlu0 %v1393, 96
        %v1515 = vpop.permute.xlu0 %1514
        %1516 = vrot.lane.b32.xlu0 %v1395, 96
        %v1517 = vpop.permute.xlu0 %1516
        %v1520 = vpack.i.b16 %v1513, %v1511
        %v1521 = vshrl.u32 %v1511, 16
        %v1522 = vshrl.u32 %v1513, 16
        %v1523 = vpack.i.b16 %v1522, %v1521
        %v1526 = vpack.i.b16 %v1517, %v1515
        %v1527 = vshrl.u32 %v1515, 16
        %v1528 = vshrl.u32 %v1517, 16
        %v1529 = vpack.i.b16 %v1528, %v1527
        %v1532 = vunpack.c.l.s4 1983009808
        %v1533 = vunpack.c.0.s8 %v1532
        %v1534 = vperm.slane %v1520, %v1533
        %v1537 = vunpack.c.l.s4 1983009808
        %v1538 = vunpack.c.0.s8 %v1537
        %v1539 = vperm.slane %v1526, %v1538
        %v1540 = vrot.slane %v1539, 4
        %v1541 = vsel %vm472, %v1540, %v1534
        %v1542 = vrot.slane %v1534, 4
        %v1543 = vsel %vm472, %v1539, %v1542
        %v1545 = vunpack.c.l.s4 1934713408
        %v1546 = vunpack.c.0.s8 %v1545
        %v1547 = vperm.slane %v1541, %v1546
        %v1549 = vunpack.c.l.s4 1934713408
        %v1550 = vunpack.c.0.s8 %v1549
        %v1551 = vperm.slane %v1543, %v1550
        %v1552 = vrot.slane %v1547, 4
        %v1553 = vsel %vm472, 0, %v1552
        %v1554 = vrot.slane %v1551, 4
        %v1555 = vsel %vm472, 0, %v1554
        %v1558 = vunpack.c.l.s4 1983009808
        %v1559 = vunpack.c.0.s8 %v1558
        %v1560 = vperm.slane %v1523, %v1559
        %v1563 = vunpack.c.l.s4 1983009808
        %v1564 = vunpack.c.0.s8 %v1563
        %v1565 = vperm.slane %v1529, %v1564
        %v1566 = vrot.slane %v1565, 4
        %v1567 = vsel %vm472, %v1566, %v1560
        %v1568 = vrot.slane %v1560, 4
        %v1569 = vsel %vm472, %v1565, %v1568
        %v1571 = vunpack.c.l.s4 1934713408
        %v1572 = vunpack.c.0.s8 %v1571
        %v1573 = vperm.slane %v1567, %v1572
        %v1575 = vunpack.c.l.s4 1934713408
        %v1576 = vunpack.c.0.s8 %v1575
        %v1577 = vperm.slane %v1569, %v1576
        %v1578 = vrot.slane %v1573, 4
        %v1579 = vsel %vm472, 0, %v1578
        %v1580 = vrot.slane %v1577, 4
        %v1581 = vsel %vm472, 0, %v1580
        %v1582 = vsel %vm472, %v1554, %v1547
        %v1584 = vunpack.c.l.s4 1983009808
        %v1585 = vunpack.c.0.s8 %v1584
        %v1586 = vperm.slane %v1582, %v1585
        %v1587 = vrot.slane %v1555, 4
        %v1588 = vsel %vm472, %v1587, %v1553
        %v1590 = vunpack.c.l.s4 1983009808
        %v1591 = vunpack.c.0.s8 %v1590
        %v1592 = vperm.slane %v1588, %v1591
        %v1593 = vrot.slane %v1592, 4
        %v1594 = vsel %vm472, %v1593, %v1586
        %v1596 = vunpack.c.l.s4 1934713408
        %v1597 = vunpack.c.0.s8 %v1596
        %v1598 = vperm.slane %v1594, %v1597
        %v1599 = vrot.slane %v1598, 4
        %v1600 = vsel %vm472, 0, %v1599
        %v1601 = vsel %vm472, %v1580, %v1573
        %v1603 = vunpack.c.l.s4 1983009808
        %v1604 = vunpack.c.0.s8 %v1603
        %v1605 = vperm.slane %v1601, %v1604
        %v1606 = vrot.slane %v1581, 4
        %v1607 = vsel %vm472, %v1606, %v1579
        %v1609 = vunpack.c.l.s4 1983009808
        %v1610 = vunpack.c.0.s8 %v1609
        %v1611 = vperm.slane %v1607, %v1610
        %v1612 = vrot.slane %v1611, 4
        %v1613 = vsel %vm472, %v1612, %v1605
        %v1615 = vunpack.c.l.s4 1934713408
        %v1616 = vunpack.c.0.s8 %v1615
        %v1617 = vperm.slane %v1613, %v1616
        %v1618 = vrot.slane %v1617, 4
        %v1619 = vsel %vm472, 0, %v1618
        %v1622 = vpack.i.b16 %v1617, %v1598
        %v1623 = vshrl.u32 %v1598, 16
        %v1624 = vshrl.u32 %v1617, 16
        %v1625 = vpack.i.b16 %v1624, %v1623
        %v1628 = vpack.i.b16 %v1619, %v1600
        %v1629 = vshrl.u32 %v1600, 16
        %v1630 = vshrl.u32 %v1619, 16
        %v1631 = vpack.i.b16 %v1630, %v1629
        %1632 = vrot.lane.b32.xlu0 %v1388, 64
        %v1633 = vpop.permute.xlu0 %1632
        %1634 = vrot.lane.b32.xlu0 %v1391, 64
        %v1635 = vpop.permute.xlu0 %1634
        %1636 = vrot.lane.b32.xlu0 %v1393, 64
        %v1637 = vpop.permute.xlu0 %1636
        %1638 = vrot.lane.b32.xlu0 %v1395, 64
        %v1639 = vpop.permute.xlu0 %1638
        %v1642 = vpack.i.b16 %v1635, %v1633
        %v1643 = vshrl.u32 %v1633, 16
        %v1644 = vshrl.u32 %v1635, 16
        %v1645 = vpack.i.b16 %v1644, %v1643
        %v1648 = vpack.i.b16 %v1639, %v1637
        %v1649 = vshrl.u32 %v1637, 16
        %v1650 = vshrl.u32 %v1639, 16
        %v1651 = vpack.i.b16 %v1650, %v1649
        %v1654 = vunpack.c.l.s4 1983009808
        %v1655 = vunpack.c.0.s8 %v1654
        %v1656 = vperm.slane %v1642, %v1655
        %v1659 = vunpack.c.l.s4 1983009808
        %v1660 = vunpack.c.0.s8 %v1659
        %v1661 = vperm.slane %v1648, %v1660
        %v1662 = vrot.slane %v1661, 4
        %v1663 = vsel %vm472, %v1662, %v1656
        %v1664 = vrot.slane %v1656, 4
        %v1665 = vsel %vm472, %v1661, %v1664
        %v1667 = vunpack.c.l.s4 1934713408
        %v1668 = vunpack.c.0.s8 %v1667
        %v1669 = vperm.slane %v1663, %v1668
        %v1671 = vunpack.c.l.s4 1934713408
        %v1672 = vunpack.c.0.s8 %v1671
        %v1673 = vperm.slane %v1665, %v1672
        %v1674 = vrot.slane %v1669, 4
        %v1675 = vsel %vm472, 0, %v1674
        %v1676 = vrot.slane %v1673, 4
        %v1677 = vsel %vm472, 0, %v1676
        %v1680 = vunpack.c.l.s4 1983009808
        %v1681 = vunpack.c.0.s8 %v1680
        %v1682 = vperm.slane %v1645, %v1681
        %v1685 = vunpack.c.l.s4 1983009808
        %v1686 = vunpack.c.0.s8 %v1685
        %v1687 = vperm.slane %v1651, %v1686
        %v1688 = vrot.slane %v1687, 4
        %v1689 = vsel %vm472, %v1688, %v1682
        %v1690 = vrot.slane %v1682, 4
        %v1691 = vsel %vm472, %v1687, %v1690
        %v1693 = vunpack.c.l.s4 1934713408
        %v1694 = vunpack.c.0.s8 %v1693
        %v1695 = vperm.slane %v1689, %v1694
        %v1697 = vunpack.c.l.s4 1934713408
        %v1698 = vunpack.c.0.s8 %v1697
        %v1699 = vperm.slane %v1691, %v1698
        %v1700 = vrot.slane %v1695, 4
        %v1701 = vsel %vm472, 0, %v1700
        %v1702 = vrot.slane %v1699, 4
        %v1703 = vsel %vm472, 0, %v1702
        %v1704 = vsel %vm472, %v1676, %v1669
        %v1706 = vunpack.c.l.s4 1983009808
        %v1707 = vunpack.c.0.s8 %v1706
        %v1708 = vperm.slane %v1704, %v1707
        %v1709 = vrot.slane %v1677, 4
        %v1710 = vsel %vm472, %v1709, %v1675
        %v1712 = vunpack.c.l.s4 1983009808
        %v1713 = vunpack.c.0.s8 %v1712
        %v1714 = vperm.slane %v1710, %v1713
        %v1715 = vrot.slane %v1714, 4
        %v1716 = vsel %vm472, %v1715, %v1708
        %v1718 = vunpack.c.l.s4 1934713408
        %v1719 = vunpack.c.0.s8 %v1718
        %v1720 = vperm.slane %v1716, %v1719
        %v1721 = vrot.slane %v1720, 4
        %v1722 = vsel %vm472, 0, %v1721
        %v1723 = vsel %vm472, %v1702, %v1695
        %v1725 = vunpack.c.l.s4 1983009808
        %v1726 = vunpack.c.0.s8 %v1725
        %v1727 = vperm.slane %v1723, %v1726
        %v1728 = vrot.slane %v1703, 4
        %v1729 = vsel %vm472, %v1728, %v1701
        %v1731 = vunpack.c.l.s4 1983009808
        %v1732 = vunpack.c.0.s8 %v1731
        %v1733 = vperm.slane %v1729, %v1732
        %v1734 = vrot.slane %v1733, 4
        %v1735 = vsel %vm472, %v1734, %v1727
        %v1737 = vunpack.c.l.s4 1934713408
        %v1738 = vunpack.c.0.s8 %v1737
        %v1739 = vperm.slane %v1735, %v1738
        %v1740 = vrot.slane %v1739, 4
        %v1741 = vsel %vm472, 0, %v1740
        %v1744 = vpack.i.b16 %v1739, %v1720
        %v1745 = vshrl.u32 %v1720, 16
        %v1746 = vshrl.u32 %v1739, 16
        %v1747 = vpack.i.b16 %v1746, %v1745
        %v1750 = vpack.i.b16 %v1741, %v1722
        %v1751 = vshrl.u32 %v1722, 16
        %v1752 = vshrl.u32 %v1741, 16
        %v1753 = vpack.i.b16 %v1752, %v1751
        %v1755 = vsel %vm811, %v1500, 0
        %v1758 = vsel %vm811, %v1622, 0
        %1760 = vmatpush.bf16.xpose.msra.mxu0 0
        %1761 = vmatpush.bf16.xpose.msra.mxu0 0
        %1762 = vmatpush.bf16.xpose.msra.mxu0 0
        %1763 = vmatpush.bf16.xpose.msra.mxu0 0
        %1764 = vmatpush.bf16.xpose.msra.mxu0 0
        %1765 = vmatpush.bf16.xpose.msra.mxu0 0
        %1766 = vmatpush.bf16.xpose.msra.mxu0 0
        %1767 = vmatpush.bf16.xpose.msra.mxu0 %v1758
        %1768 = vmatmul.bf16.gmra.mxu0 %v1755
        %v1769 = vpop.f32.mrf.mxu0
        %v1770 = vadd.f32 %v809, %v1769
        %v1771 = vpop.f32.mrf.mxu0
        %1772 = vdwg.mxu0
        %v1774 = vsel %vm811, %v1503, 0
        %v1777 = vsel %vm811, %v1625, 0
        %1779 = vmatpush.bf16.xpose.msra.mxu0 0
        %1780 = vmatpush.bf16.xpose.msra.mxu0 0
        %1781 = vmatpush.bf16.xpose.msra.mxu0 0
        %1782 = vmatpush.bf16.xpose.msra.mxu0 0
        %1783 = vmatpush.bf16.xpose.msra.mxu0 0
        %1784 = vmatpush.bf16.xpose.msra.mxu0 0
        %1785 = vmatpush.bf16.xpose.msra.mxu0 0
        %1786 = vmatpush.bf16.xpose.msra.mxu0 %v1777
        %1787 = vmatmul.bf16.gmra.mxu0 %v1774
        %v1788 = vpop.f32.mrf.mxu0
        %v1789 = vadd.f32 %v809, %v1788
        %v1790 = vpop.f32.mrf.mxu0
        %1791 = vdwg.mxu0
        %v1793 = vsel %vm811, %v1506, 0
        %v1796 = vsel %vm811, %v1628, 0
        %1798 = vmatpush.bf16.xpose.msra.mxu0 0
        %1799 = vmatpush.bf16.xpose.msra.mxu0 0
        %1800 = vmatpush.bf16.xpose.msra.mxu0 0
        %1801 = vmatpush.bf16.xpose.msra.mxu0 0
        %1802 = vmatpush.bf16.xpose.msra.mxu0 0
        %1803 = vmatpush.bf16.xpose.msra.mxu0 0
        %1804 = vmatpush.bf16.xpose.msra.mxu0 0
        %1805 = vmatpush.bf16.xpose.msra.mxu0 %v1796
        %1806 = vmatmul.bf16.gmra.mxu0 %v1793
        %v1807 = vpop.f32.mrf.mxu0
        %v1808 = vadd.f32 %v809, %v1807
        %v1809 = vpop.f32.mrf.mxu0
        %1810 = vdwg.mxu0
        %v1812 = vsel %vm811, %v1509, 0
        %v1815 = vsel %vm811, %v1631, 0
        %1817 = vmatpush.bf16.xpose.msra.mxu0 0
        %1818 = vmatpush.bf16.xpose.msra.mxu0 0
        %1819 = vmatpush.bf16.xpose.msra.mxu0 0
        %1820 = vmatpush.bf16.xpose.msra.mxu0 0
        %1821 = vmatpush.bf16.xpose.msra.mxu0 0
        %1822 = vmatpush.bf16.xpose.msra.mxu0 0
        %1823 = vmatpush.bf16.xpose.msra.mxu0 0
        %1824 = vmatpush.bf16.xpose.msra.mxu0 %v1815
        %1825 = vmatmul.bf16.gmra.mxu0 %v1812
        %v1826 = vpop.f32.mrf.mxu0
        %v1827 = vadd.f32 %v809, %v1826
        %v1828 = vpop.f32.mrf.mxu0
        %1829 = vdwg.mxu0
        %v1830 = vsel %vm811, %v1770, -inf
        %1831 = vmax.xlane.f32.xlu0 %v1830
        %v1832 = vpop.xlane.xlu0 %1831
        %v1833 = vsel %vm811, %v1789, -inf
        %1834 = vmax.xlane.f32.xlu0 %v1833
        %v1835 = vpop.xlane.xlu0 %1834
        %v1836 = vsel %vm811, %v1808, -inf
        %1837 = vmax.xlane.f32.xlu0 %v1836
        %v1838 = vpop.xlane.xlu0 %1837
        %v1839 = vsel %vm811, %v1827, -inf
        %1840 = vmax.xlane.f32.xlu0 %v1839
        %v1841 = vpop.xlane.xlu0 %1840
        %v1842 = vsub.f32 %v1770, %v1832
        %v1843 = vsub.f32 %v1789, %v1835
        %v1844 = vsub.f32 %v1808, %v1838
        %v1845 = vsub.f32 %v1827, %v1841
        %v1846 = vmul.f32 %v1842, 1.442695
        %v1847 = vpow.pop %v1846
        %v1848 = vmul.f32 %v1843, 1.442695
        %v1849 = vpow.pop %v1848
        %v1850 = vmul.f32 %v1844, 1.442695
        %v1851 = vpow.pop %v1850
        %v1852 = vmul.f32 %v1845, 1.442695
        %v1853 = vpow.pop %v1852
        %v1854 = vsel %vm811, %v1847, 0.0
        %1855 = vadd.xlane.f32.xlu0 %v1854
        %v1856 = vpop.xlane.xlu0 %1855
        %v1857 = vsel %vm811, %v1849, 0.0
        %1858 = vadd.xlane.f32.xlu0 %v1857
        %v1859 = vpop.xlane.xlu0 %1858
        %v1860 = vsel %vm811, %v1851, 0.0
        %1861 = vadd.xlane.f32.xlu0 %v1860
        %v1862 = vpop.xlane.xlu0 %1861
        %v1863 = vsel %vm811, %v1853, 0.0
        %1864 = vadd.xlane.f32.xlu0 %v1863
        %v1865 = vpop.xlane.xlu0 %1864
        %v1866 = vrcp.pop %v1856
        %v1867 = vrcp.pop %v1859
        %v1868 = vrcp.pop %v1862
        %v1869 = vrcp.pop %v1865
        %v1870 = vmul.f32 %v1847, %v1866
        %v1871 = vmul.f32 %v1849, %v1867
        %v1872 = vmul.f32 %v1851, %v1868
        %v1873 = vmul.f32 %v1853, %v1869
        %v1874 = vpack.c.bf16 %v1870, %v1870
        %v1875 = vpack.c.bf16 %v1871, %v1871
        %v1876 = vpack.c.bf16 %v1872, %v1872
        %v1877 = vpack.c.bf16 %v1873, %v1873
        %v1879 = vsel %vm811, %v1874, 0
        %v1882 = vsel %vm939, %v1744, 0
        %1884 = vmatpush.bf16.msra.mxu0 0
        %1885 = vmatpush.bf16.msra.mxu0 0
        %1886 = vmatpush.bf16.msra.mxu0 0
        %1887 = vmatpush.bf16.msra.mxu0 0
        %1888 = vmatpush.bf16.msra.mxu0 0
        %1889 = vmatpush.bf16.msra.mxu0 0
        %1890 = vmatpush.bf16.msra.mxu0 0
        %1891 = vmatpush.bf16.msra.mxu0 %v1882
        %1892 = vmatmul.bf16.gmra.mxu0 %v1879
        %v1893 = vpop.f32.mrf.mxu0
        %v1894 = vadd.f32 0.0, %v1893
        %v1895 = vpop.f32.mrf.mxu0
        %1896 = vdwg.mxu0
        %v1898 = vsel %vm811, %v1875, 0
        %v1901 = vsel %vm939, %v1747, 0
        %1903 = vmatpush.bf16.msra.mxu0 0
        %1904 = vmatpush.bf16.msra.mxu0 0
        %1905 = vmatpush.bf16.msra.mxu0 0
        %1906 = vmatpush.bf16.msra.mxu0 0
        %1907 = vmatpush.bf16.msra.mxu0 0
        %1908 = vmatpush.bf16.msra.mxu0 0
        %1909 = vmatpush.bf16.msra.mxu0 0
        %1910 = vmatpush.bf16.msra.mxu0 %v1901
        %1911 = vmatmul.bf16.gmra.mxu0 %v1898
        %v1912 = vpop.f32.mrf.mxu0
        %v1913 = vadd.f32 0.0, %v1912
        %v1914 = vpop.f32.mrf.mxu0
        %1915 = vdwg.mxu0
        %v1917 = vsel %vm811, %v1876, 0
        %v1920 = vsel %vm939, %v1750, 0
        %1922 = vmatpush.bf16.msra.mxu0 0
        %1923 = vmatpush.bf16.msra.mxu0 0
        %1924 = vmatpush.bf16.msra.mxu0 0
        %1925 = vmatpush.bf16.msra.mxu0 0
        %1926 = vmatpush.bf16.msra.mxu0 0
        %1927 = vmatpush.bf16.msra.mxu0 0
        %1928 = vmatpush.bf16.msra.mxu0 0
        %1929 = vmatpush.bf16.msra.mxu0 %v1920
        %1930 = vmatmul.bf16.gmra.mxu0 %v1917
        %v1931 = vpop.f32.mrf.mxu0
        %v1932 = vadd.f32 0.0, %v1931
        %v1933 = vpop.f32.mrf.mxu0
        %1934 = vdwg.mxu0
        %v1936 = vsel %vm811, %v1877, 0
        %v1939 = vsel %vm939, %v1753, 0
        %1941 = vmatpush.bf16.msra.mxu0 0
        %1942 = vmatpush.bf16.msra.mxu0 0
        %1943 = vmatpush.bf16.msra.mxu0 0
        %1944 = vmatpush.bf16.msra.mxu0 0
        %1945 = vmatpush.bf16.msra.mxu0 0
        %1946 = vmatpush.bf16.msra.mxu0 0
        %1947 = vmatpush.bf16.msra.mxu0 0
        %1948 = vmatpush.bf16.msra.mxu0 %v1939
        %1949 = vmatmul.bf16.gmra.mxu0 %v1936
        %v1950 = vpop.f32.mrf.mxu0
        %v1951 = vadd.f32 0.0, %v1950
        %v1952 = vpop.f32.mrf.mxu0
        %1953 = vdwg.mxu0
        %v1954 = vrot.slane %v1932, 4
        %v1955 = vsel %vm1014, %v1954, %v1894
        %v1956 = vrot.slane %v1894, 4
        %v1957 = vsel %vm1014, %v1932, %v1956
        %v1959 = vunpack.c.l.s4 1983009808
        %v1960 = vunpack.c.0.s8 %v1959
        %v1961 = vperm.slane %v1955, %v1960
        %v1963 = vunpack.c.l.s4 1983009808
        %v1964 = vunpack.c.0.s8 %v1963
        %v1965 = vperm.slane %v1957, %v1964
        %v1966 = vrot.slane %v1951, 4
        %v1967 = vsel %vm1014, %v1966, %v1913
        %v1968 = vrot.slane %v1913, 4
        %v1969 = vsel %vm1014, %v1951, %v1968
        %v1971 = vunpack.c.l.s4 1983009808
        %v1972 = vunpack.c.0.s8 %v1971
        %v1973 = vperm.slane %v1967, %v1972
        %v1975 = vunpack.c.l.s4 1983009808
        %v1976 = vunpack.c.0.s8 %v1975
        %v1977 = vperm.slane %v1969, %v1976
        %v1978 = vrot.slane %v1973, 4
        %v1979 = vsel %vm1014, %v1978, %v1961
        %v1980 = vrot.slane %v1961, 4
        %v1981 = vsel %vm1014, %v1973, %v1980
        %v1983 = vunpack.c.l.s4 1934713408
        %v1984 = vunpack.c.0.s8 %v1983
        %v1985 = vperm.slane %v1979, %v1984
        %v1987 = vunpack.c.l.s4 1934713408
        %v1988 = vunpack.c.0.s8 %v1987
        %v1989 = vperm.slane %v1981, %v1988
        %v1990 = vrot.slane %v1977, 4
        %v1991 = vsel %vm1014, %v1990, %v1965
        %v1992 = vrot.slane %v1965, 4
        %v1993 = vsel %vm1014, %v1977, %v1992
        %v1995 = vunpack.c.l.s4 1934713408
        %v1996 = vunpack.c.0.s8 %v1995
        %v1997 = vperm.slane %v1991, %v1996
        %v1999 = vunpack.c.l.s4 1934713408
        %v2000 = vunpack.c.0.s8 %v1999
        %v2001 = vperm.slane %v1993, %v2000
        %v2002 = vrot.slane %v1985, 4
        %v2003 = vsel %vm1014, 0.0, %v2002
        %v2004 = vrot.slane %v1989, 4
        %v2005 = vsel %vm1014, 0.0, %v2004
        %v2006 = vrot.slane %v1997, 4
        %v2007 = vsel %vm1014, 0.0, %v2006
        %v2008 = vrot.slane %v2001, 4
        %v2009 = vsel %vm1014, 0.0, %v2008
        %v2010 = vsel %vm1014, %v2004, %v1985
        %v2012 = vunpack.c.l.s4 1983009808
        %v2013 = vunpack.c.0.s8 %v2012
        %v2014 = vperm.slane %v2010, %v2013
        %v2015 = vrot.slane %v2005, 4
        %v2016 = vsel %vm1014, %v2015, %v2003
        %v2018 = vunpack.c.l.s4 1983009808
        %v2019 = vunpack.c.0.s8 %v2018
        %v2020 = vperm.slane %v2016, %v2019
        %v2021 = vsel %vm1014, %v2008, %v1997
        %v2023 = vunpack.c.l.s4 1983009808
        %v2024 = vunpack.c.0.s8 %v2023
        %v2025 = vperm.slane %v2021, %v2024
        %v2026 = vrot.slane %v2009, 4
        %v2027 = vsel %vm1014, %v2026, %v2007
        %v2029 = vunpack.c.l.s4 1983009808
        %v2030 = vunpack.c.0.s8 %v2029
        %v2031 = vperm.slane %v2027, %v2030
        %v2032 = vrot.slane %v2020, 4
        %v2033 = vsel %vm1014, %v2032, %v2014
        %v2034 = vrot.slane %v2014, 4
        %v2035 = vsel %vm1014, %v2020, %v2034
        %v2037 = vunpack.c.l.s4 1934713408
        %v2038 = vunpack.c.0.s8 %v2037
        %v2039 = vperm.slane %v2033, %v2038
        %v2041 = vunpack.c.l.s4 1934713408
        %v2042 = vunpack.c.0.s8 %v2041
        %v2043 = vperm.slane %v2035, %v2042
        %v2044 = vrot.slane %v2031, 4
        %v2045 = vsel %vm1014, %v2044, %v2025
        %v2046 = vrot.slane %v2025, 4
        %v2047 = vsel %vm1014, %v2031, %v2046
        %v2049 = vunpack.c.l.s4 1934713408
        %v2050 = vunpack.c.0.s8 %v2049
        %v2051 = vperm.slane %v2045, %v2050
        %v2053 = vunpack.c.l.s4 1934713408
        %v2054 = vunpack.c.0.s8 %v2053
        %v2055 = vperm.slane %v2047, %v2054
        %v2056 = vrot.slane %v2051, 4
        %v2057 = vsel %vm1014, %v2056, %v2039
        %v2058 = vrot.slane %v2039, 4
        %v2059 = vsel %vm1014, %v2051, %v2058
        %v2060 = vrot.slane %v2055, 4
        %v2061 = vsel %vm1014, %v2060, %v2043
        %v2062 = vrot.slane %v2043, 4
        %v2063 = vsel %vm1014, %v2055, %v2062
        %2065 = vrot.lane.b32.xlu0 %v2059, 8
        %v2066 = vpop.permute.xlu0 %2065
        %2069 = vrot.lane.b32.xlu0 %v2061, 16
        %v2070 = vpop.permute.xlu0 %2069
        %2073 = vrot.lane.b32.xlu0 %v2063, 24
        %v2074 = vpop.permute.xlu0 %2073
        %v2076 = vsel %vm811, %v2057, %v2066
        %v2077 = vsel %vm1137, %v2076, %v2070
        %v2078 = vsel %vm1139, %v2077, %v2074
        %v2079 = vpack.c.bf16 %v2078, %v2078
        %s2080 = scalar_lea.vmem %s3, 16
        %v2081 = vld [vmem:[%s2080] sm:$0xf]
        %v2082 = vld [vmem:[%s2080 + $0x4] sm:$0xf]
        %v2083 = vld [vmem:[%s2080 + $0x8] sm:$0xf]
        %v2084 = vld [vmem:[%s2080 + $0xc] sm:$0xf]
        %v2085 = vperm.slane %v1352, 1
        %v2090 = vunpack.c.l.b16 %v2081
        %v2091 = vunpack.c.l.b16 %v2082
        %v2092 = vunpack.c.l.b16 %v2083
        %v2093 = vunpack.c.l.b16 %v2084
        %v2094 = vpack.c.b16 %v2091, %v2090
        %v2095 = vpack.c.b16 %v2093, %v2092
        %v2099 = vsel %vm371, %v2079, 0
        %2101 = vmatpush.bf16.msra.mxu0 0
        %2102 = vmatpush.bf16.msra.mxu0 0
        %2103 = vmatpush.bf16.msra.mxu0 0
        %2104 = vmatpush.bf16.msra.mxu0 0
        %2105 = vmatpush.bf16.msra.mxu0 0
        %2106 = vmatpush.bf16.msra.mxu0 0
        %2107 = vmatpush.bf16.msra.mxu0 %v2095
        %2108 = vmatpush.bf16.msra.mxu0 %v2094
        %2109 = vmatmul.bf16.gmra.mxu0 %v2099
        %v2110 = vpop.f32.mrf.mxu0
        %v2111 = vadd.f32 %v2085, %v2110
        %v2112 = vpop.f32.mrf.mxu0
        %2113 = vdwg.mxu0
        %v2114 = vadd.f32 %v1350, %v2111
        %v2115 = vsel %vm371, %v2114, 0.0
        %2116 = vadd.xlane.f32.xlu0 %v2115
        %v2117 = vpop.xlane.xlu0 %2116
        %v2118 = vmul.f32 %v2117, %v381
        %v2119 = vsub.f32 %v2114, %v2118
        %v2120 = vmul.f32 %v2119, %v2119
        %v2121 = vsel %vm371, %v2120, 0.0
        %2122 = vadd.xlane.f32.xlu0 %v2121
        %v2123 = vpop.xlane.xlu0 %2122
        %v2124 = vmul.f32 %v2123, %v381
        %v2125 = vadd.f32 %v2124, 1e-12
        %v2126 = vrsqrt.pop %v2125
        %v2127 = vmul.f32 %v2126, %v2125
        %v2128 = vmul.f32 %v2127, %v2126
        %v2129 = vmul.f32 0.5, %v2128
        %v2130 = vsub.f32 1.5, %v2129
        %v2131 = vmul.f32 %v2126, %v2130
        %vm2132 = vweird.f32 %v2125
        %vm2133 = vweird.f32 %v2126
        %vm2134 = vmor %vm2132, %vm2133
        %v2135 = vsel %vm2134, %v2126, %v2131
        %v2136 = vmul.f32 %v2119, %v2135
        %v2137 = vperm.slane %v1352, 2
        %v2138 = vmul.f32 %v2136, %v2137
        %v2139 = vperm.slane %v1352, 3
        %v2140 = vadd.f32 %v2138, %v2139
        %v2141 = vpack.c.bf16 %v2140, %v2140
        %s2142 = scalar_lea.vmem %s4, 16
        %v2143 = vld [vmem:[%s2142] sm:$0xf]
        %v2144 = vld [vmem:[%s2142 + $0x4] sm:$0xf]
        %v2145 = vld [vmem:[%s2142 + $0x8] sm:$0xf]
        %v2146 = vld [vmem:[%s2142 + $0xc] sm:$0xf]
        %v2147 = vperm.slane %v1352, 4
        %v2152 = vunpack.c.l.b16 %v2143
        %v2153 = vunpack.c.l.b16 %v2144
        %v2154 = vunpack.c.l.b16 %v2145
        %v2155 = vunpack.c.l.b16 %v2146
        %v2156 = vpack.c.b16 %v2153, %v2152
        %v2157 = vpack.c.b16 %v2155, %v2154
        %v2161 = vsel %vm371, %v2141, 0
        %2163 = vmatpush.bf16.msra.mxu0 0
        %2164 = vmatpush.bf16.msra.mxu0 0
        %2165 = vmatpush.bf16.msra.mxu0 0
        %2166 = vmatpush.bf16.msra.mxu0 0
        %2167 = vmatpush.bf16.msra.mxu0 0
        %2168 = vmatpush.bf16.msra.mxu0 0
        %2169 = vmatpush.bf16.msra.mxu0 %v2157
        %2170 = vmatpush.bf16.msra.mxu0 %v2156
        %2171 = vmatmul.bf16.gmra.mxu0 %v2161
        %v2172 = vpop.f32.mrf.mxu0
        %v2173 = vadd.f32 %v2147, %v2172
        %v2174 = vpop.f32.mrf.mxu0
        %2175 = vdwg.mxu0
        %v2176 = vmul.f32 %v2173, 0.5
        %v2177 = vmul.f32 %v2173, 0.044715
        %v2178 = vmul.f32 %v2177, %v2173
        %v2179 = vmul.f32 %v2178, %v2173
        %v2180 = vadd.f32 %v2173, %v2179
        %v2181 = vmul.f32 %v2180, 0.7978846
        %v2182 = vtanh.pop %v2181
        %v2183 = vadd.f32 %v2182, 1.0
        %v2184 = vmul.f32 %v2176, %v2183
        %v2185 = vpack.c.bf16 %v2184, %v2184
        %s2186 = scalar_lea.vmem %s5, 64
        %v2187 = vld [vmem:[%s2186] sm:$0xf]
        %v2188 = vld [vmem:[%s2186 + $0x4] sm:$0xf]
        %v2189 = vld [vmem:[%s2186 + $0x8] sm:$0xf]
        %v2190 = vld [vmem:[%s2186 + $0xc] sm:$0xf]
        %v2191 = vld [vmem:[%s2186 + $0x10] sm:$0xf]
        %v2192 = vld [vmem:[%s2186 + $0x14] sm:$0xf]
        %v2193 = vld [vmem:[%s2186 + $0x18] sm:$0xf]
        %v2194 = vld [vmem:[%s2186 + $0x1c] sm:$0xf]
        %v2195 = vld [vmem:[%s2186 + $0x20] sm:$0xf]
        %v2196 = vld [vmem:[%s2186 + $0x24] sm:$0xf]
        %v2197 = vld [vmem:[%s2186 + $0x28] sm:$0xf]
        %v2198 = vld [vmem:[%s2186 + $0x2c] sm:$0xf]
        %v2199 = vld [vmem:[%s2186 + $0x30] sm:$0xf]
        %v2200 = vld [vmem:[%s2186 + $0x34] sm:$0xf]
        %v2201 = vld [vmem:[%s2186 + $0x38] sm:$0xf]
        %v2202 = vld [vmem:[%s2186 + $0x3c] sm:$0xf]
        %v2203 = vperm.slane %v1352, 5
        %v2220 = vunpack.c.l.b16 %v2187
        %v2221 = vunpack.c.l.b16 %v2188
        %v2222 = vunpack.c.l.b16 %v2189
        %v2223 = vunpack.c.l.b16 %v2190
        %v2224 = vunpack.c.l.b16 %v2191
        %v2225 = vunpack.c.l.b16 %v2192
        %v2226 = vunpack.c.l.b16 %v2193
        %v2227 = vunpack.c.l.b16 %v2194
        %v2228 = vunpack.c.l.b16 %v2195
        %v2229 = vunpack.c.l.b16 %v2196
        %v2230 = vunpack.c.l.b16 %v2197
        %v2231 = vunpack.c.l.b16 %v2198
        %v2232 = vunpack.c.l.b16 %v2199
        %v2233 = vunpack.c.l.b16 %v2200
        %v2234 = vunpack.c.l.b16 %v2201
        %v2235 = vunpack.c.l.b16 %v2202
        %v2236 = vpack.c.b16 %v2221, %v2220
        %v2237 = vpack.c.b16 %v2223, %v2222
        %v2238 = vpack.c.b16 %v2225, %v2224
        %v2239 = vpack.c.b16 %v2227, %v2226
        %v2240 = vpack.c.b16 %v2229, %v2228
        %v2241 = vpack.c.b16 %v2231, %v2230
        %v2242 = vpack.c.b16 %v2233, %v2232
        %v2243 = vpack.c.b16 %v2235, %v2234
        %2252 = vmatpush.bf16.msra.mxu0 %v2243
        %2253 = vmatpush.bf16.msra.mxu0 %v2242
        %2254 = vmatpush.bf16.msra.mxu0 %v2241
        %2255 = vmatpush.bf16.msra.mxu0 %v2240
        %2256 = vmatpush.bf16.msra.mxu0 %v2239
        %2257 = vmatpush.bf16.msra.mxu0 %v2238
        %2258 = vmatpush.bf16.msra.mxu0 %v2237
        %2259 = vmatpush.bf16.msra.mxu0 %v2236
        %2260 = vmatmul.bf16.gmra.mxu0 %v2185
        %v2261 = vpop.f32.mrf.mxu0
        %v2262 = vadd.f32 %v2203, %v2261
        %v2263 = vpop.f32.mrf.mxu0
        %2264 = vdwg.mxu0
        %v2265 = vadd.f32 %v2140, %v2262
        %v2266 = vsel %vm371, %v2265, 0.0
        %2267 = vadd.xlane.f32.xlu0 %v2266
        %v2268 = vpop.xlane.xlu0 %2267
        %v2269 = vmul.f32 %v2268, %v381
        %v2270 = vsub.f32 %v2265, %v2269
        %v2271 = vmul.f32 %v2270, %v2270
        %v2272 = vsel %vm371, %v2271, 0.0
        %2273 = vadd.xlane.f32.xlu0 %v2272
        %v2274 = vpop.xlane.xlu0 %2273
        %v2275 = vmul.f32 %v2274, %v381
        %v2276 = vadd.f32 %v2275, 1e-12
        %v2277 = vrsqrt.pop %v2276
        %v2278 = vmul.f32 %v2277, %v2276
        %v2279 = vmul.f32 %v2278, %v2277
        %v2280 = vmul.f32 0.5, %v2279
        %v2281 = vsub.f32 1.5, %v2280
        %v2282 = vmul.f32 %v2277, %v2281
        %vm2283 = vweird.f32 %v2276
        %vm2284 = vweird.f32 %v2277
        %vm2285 = vmor %vm2283, %vm2284
        %v2286 = vsel %vm2285, %v2277, %v2282
        %v2287 = vmul.f32 %v2270, %v2286
        %v2288 = vperm.slane %v1352, 6
        %v2289 = vmul.f32 %v2287, %v2288
        %v2290 = vperm.slane %v1352, 7
        %v2291 = vadd.f32 %v2289, %v2290
        %v2292 = vpack.c.bf16 %v2291, %v2291
        %v2293 = vld [vmem:[%s8] sm:$0xf]
        %v2294 = vld [vmem:[%s8 + $0x4] sm:$0xf]
        %v2295 = vld [vmem:[%s8 + $0x8] sm:$0xf]
        %v2296 = vld [vmem:[%s8 + $0xc] sm:$0xf]
        %v2301 = vunpack.c.l.b16 %v2293
        %v2302 = vunpack.c.l.b16 %v2294
        %v2303 = vunpack.c.l.b16 %v2295
        %v2304 = vunpack.c.l.b16 %v2296
        %v2305 = vpack.c.b16 %v2302, %v2301
        %v2306 = vpack.c.b16 %v2304, %v2303
        %v2310 = vrot.slane %v369, 2
        %v2313 = vsel %vm371, %v2292, 0
        %2315 = vmatpush.bf16.msra.mxu0 0
        %2316 = vmatpush.bf16.msra.mxu0 0
        %2317 = vmatpush.bf16.msra.mxu0 0
        %2318 = vmatpush.bf16.msra.mxu0 0
        %2319 = vmatpush.bf16.msra.mxu0 0
        %2320 = vmatpush.bf16.msra.mxu0 0
        %2321 = vmatpush.bf16.msra.mxu0 %v2306
        %2322 = vmatpush.bf16.msra.mxu0 %v2305
        %2323 = vmatmul.bf16.gmra.mxu0 %v2313
        %v2324 = vpop.f32.mrf.mxu0
        %v2325 = vadd.f32 %v2310, %v2324
        %v2326 = vpop.f32.mrf.mxu0
        %2327 = vdwg.mxu0
        %v2328 = vmax.f32 %v2325, 0.0
        %v2329 = vpack.c.bf16 %v2328, %v2328
        %v2330 = vld [vmem:[%s9] sm:$0xf]
        %v2331 = vld [vmem:[%s9 + $0x4] sm:$0xf]
        %v2332 = vld [vmem:[%s9 + $0x8] sm:$0xf]
        %v2333 = vld [vmem:[%s9 + $0xc] sm:$0xf]
        %v2338 = vunpack.c.l.b16 %v2330
        %v2339 = vunpack.c.l.b16 %v2331
        %v2340 = vunpack.c.l.b16 %v2332
        %v2341 = vunpack.c.l.b16 %v2333
        %v2342 = vpack.c.b16 %v2339, %v2338
        %v2343 = vpack.c.b16 %v2341, %v2340
        %v2346 = vrot.slane %v369, 3
        %v2349 = vsel %vm371, %v2329, 0
        %2351 = vmatpush.bf16.msra.mxu0 0
        %2352 = vmatpush.bf16.msra.mxu0 0
        %2353 = vmatpush.bf16.msra.mxu0 0
        %2354 = vmatpush.bf16.msra.mxu0 0
        %2355 = vmatpush.bf16.msra.mxu0 0
        %2356 = vmatpush.bf16.msra.mxu0 0
        %2357 = vmatpush.bf16.msra.mxu0 %v2343
        %2358 = vmatpush.bf16.msra.mxu0 %v2342
        %2359 = vmatmul.bf16.gmra.mxu0 %v2349
        %v2360 = vpop.f32.mrf.mxu0
        %v2361 = vadd.f32 %v2346, %v2360
        %v2362 = vpop.f32.mrf.mxu0
        %2363 = vdwg.mxu0
        %vm2364 = vcmask 8192
        %2365 = vst.msk [vmem:[%s360] sm:$0x1] %vm2364, %v2361
        %s2366 = sand.u32 %s252, 1
        %s2367 = scalar_lea.sflag [#allocation3], %s2366
        %s2368 = sand.u32 %s252, 1
        %s2369 = scalar_lea.vmem [#allocation2], %s2368
        // Predicated region
        $region61: #{tpu_custom_call.1} parent=59 // pred_check
          %p2370 = pneg %p262
        $region62: #{tpu_custom_call.1} parent=59 // pred_check_branch
          %2372 = sbr.rel (%p2370) target = $region64
        $region63: #{tpu_custom_call.1} parent=59 // pred_region
          %2374 = vsyncadd %s2367, 0
          %s2375 = scalar_lea.hbm %s10, %s24
          %s2377 = sshll.u32 %s2369, 4
          %s2378 = int_to_ptr.vmem [resolvable:$true] %s2377
          %s2379 = sshll.u32 %s2375, 4
          %s2380 = int_to_ptr.hbm [resolvable:$true] %s2379
          %2382 = dma.vmem_to_hbm [thread:$0]  %s2378, 16, %s2380, %s2367
        $region64: #{tpu_custom_call.1} parent=59 // pred_fallthru
          _
      $region60: #{tpu_custom_call.1} parent=5 // pred_fallthru
        _
      %p2383 = scmp.le.s32.totalorder 2, %s19
      // Predicated region
      $region65: #{tpu_custom_call.1} parent=5 // pred_check
        %p2384 = pneg %p2383
      $region66: #{tpu_custom_call.1} parent=5 // pred_check_branch
        %2386 = sbr.rel (%p2384) target = $region68
      $region67: #{tpu_custom_call.1} parent=5 // pred_region
        %s2387 = ssub.s32 %s19, 2
        // Predicated region
        $region69: #{tpu_custom_call.1} parent=67 // pred_check
          %p2388 = pneg %p268
        $region70: #{tpu_custom_call.1} parent=67 // pred_check_branch
          %2390 = sbr.rel (%p2388) target = $region72
        $region71: #{tpu_custom_call.1} parent=67 // pred_region
          %s2391 = sand.u32 %s253, 1
          %s2392 = scalar_lea.sflag [#allocation3], %s2391
          %s2393 = sand.u32 %s253, 1
          %s2394 = scalar_lea.vmem [#allocation2], %s2393
          %2396 = dma.done %s2392, 16
        $region72: #{tpu_custom_call.1} parent=67 // pred_fallthru
          _
      $region68: #{tpu_custom_call.1} parent=5 // pred_fallthru
        _
    $region6: #{tpu_custom_call.1} parent=1 // loop_footer
      %s23 = sadd.s32 1, %s19
    $region7: #{tpu_custom_call.1} parent=1 // loop_footer_branch
      %18 = sbr.rel target = $region3
    $region8: #{tpu_custom_call.1} parent=1 // loop_exit
      _
    %2397 = vsyncpa [#allocation3], 1
    %s2398 = scalar_lea.sflag [#allocation3], 1
    %2399 = vsyncpa %s2398, 1

</llo_original>
